<compile_context>
chip_gen: v5e
topology: v5e:2x2
jax: 0.10.0
libtpu: 0.0.40
codegen_flags: <defaults>
</compile_context>

<pallas_src>
import functools

import jax
import jax.numpy as jnp
from jax.experimental import pallas as pl
from jax.experimental.pallas import tpu as pltpu

LANE = 128      # TPU lane width: hidden dims are padded to this
IN_PAD = 8      # input feature dim (2) padded to one sublane group
OUT_PAD = 8     # final output dim (1) padded to 8 lanes (full-dim block is legal)


def _round_up(n, m):
    return ((n + m - 1) // m) * m


def _silu_f32(x):
    # SiLU with a single EUP transcendental: x*sigmoid(x) == 0.5*x*(tanh(x/2)+1).
    return 0.5 * x * (jnp.tanh(0.5 * x) + 1.0)


def mlp_kernel(x_ref,
               w1_ref, b1_ref,
               w2_ref, b2_ref,
               w3_ref, b3_ref,
               w4_ref, b4_ref,
               o_ref):
    """Fused 4-layer MLP forward for one batch tile; all operands in VMEM.

    MXU inputs are bf16 (weights stored bf16, activations cast just before the
    dot); accumulation, bias-add and SiLU are f32 (v5e-safe elementwise path).
    """
    x = x_ref[...].astype(jnp.bfloat16)                                     # [TB, 8] bf16

    h = jnp.dot(x, w1_ref[...],
                preferred_element_type=jnp.float32) + b1_ref[...]           # [TB, 128] f32
    h = _silu_f32(h)

    h = jnp.dot(h.astype(jnp.bfloat16), w2_ref[...],
                preferred_element_type=jnp.float32) + b2_ref[...]           # [TB, 128] f32
    h = _silu_f32(h)

    h = jnp.dot(h.astype(jnp.bfloat16), w3_ref[...],
                preferred_element_type=jnp.float32) + b3_ref[...]           # [TB, 128] f32
    h = _silu_f32(h)

    y = jnp.dot(h.astype(jnp.bfloat16), w4_ref[...],
                preferred_element_type=jnp.float32) + b4_ref[...]           # [TB, 8] f32
    o_ref[...] = y.astype(o_ref.dtype)


def init_params(key, hidden_size):
    """Deterministic init mirroring nn.Linear shapes (stored as (in, out))."""
    dims = [(2, hidden_size),
            (hidden_size, hidden_size),
            (hidden_size, hidden_size),
            (hidden_size, 1)]
    params = []
    for fan_in, fan_out in dims:
        key, kw, kb = jax.random.split(key, 3)
        bound = 1.0 / jnp.sqrt(fan_in)  # PyTorch default uniform init bound
        w = jax.random.uniform(kw, (fan_in, fan_out), jnp.float32, -bound, bound)
        b = jax.random.uniform(kb, (1, fan_out), jnp.float32, -bound, bound)
        params.append((w, b))
    return params


def pad_params(params):
    """One-time padding to tile-aligned shapes; weights cast to bf16 once.

    Zero padding is exact: padded input cols, padded weight rows/cols and
    padded bias lanes are all zero, and SiLU(0)=0, so padded lanes stay zero
    through every layer; column 0 of the output is the true result.
    """
    (w1, b1), (w2, b2), (w3, b3), (w4, b4) = params

    def pad2(a, rows, cols, dtype):
        p = jnp.pad(a, ((0, rows - a.shape[0]), (0, cols - a.shape[1])))
        return p.astype(dtype)

    w1p = pad2(w1, IN_PAD, LANE, jnp.bfloat16)     # (2,H)  -> (8,128)   bf16
    w2p = pad2(w2, LANE, LANE, jnp.bfloat16)       # (H,H)  -> (128,128) bf16
    w3p = pad2(w3, LANE, LANE, jnp.bfloat16)       # (H,H)  -> (128,128) bf16
    w4p = pad2(w4, LANE, OUT_PAD, jnp.bfloat16)    # (H,1)  -> (128,8)   bf16
    b1p = pad2(b1, 1, LANE, jnp.float32)           # (1,H)  -> (1,128)   f32
    b2p = pad2(b2, 1, LANE, jnp.float32)
    b3p = pad2(b3, 1, LANE, jnp.float32)
    b4p = pad2(b4, 1, OUT_PAD, jnp.float32)        # (1,1)  -> (1,8)     f32
    return (w1p, b1p, w2p, b2p, w3p, b3p, w4p, b4p)


@functools.partial(jax.jit, static_argnames=("block_rows",))
def mlp_forward(x, padded_params, block_rows=512):
    """x: [B, 2] float32 -> [B, 1] float32 via a batch-gridded fused kernel.

    Jitted so the pad / pallas_call / slice fuse into one executable.
    """
    w1, b1, w2, b2, w3, b3, w4, b4 = padded_params
    B = x.shape[0]

    # Batch tile: multiple of 8 sublanes, capped at block_rows. For any
    # non-trivial B, split into >= 2 grid steps so the "parallel" batch axis
    # feeds both v7x TensorCores; on v5e/v6e the extra step is just one more
    # cheap loop iteration (per-step overhead ~0.35 us).
    if B >= 16:
        tb = min(block_rows, _round_up(pl.cdiv(B, 2), 8))
    else:
        tb = _round_up(max(B, 1), 8)
    b_pad = _round_up(B, tb)

    # Pad batch rows to a multiple of the tile and feature dim 2 -> 8.
    xp = jnp.pad(x.astype(jnp.float32),
                 ((0, b_pad - B), (0, IN_PAD - x.shape[1])))

    # Weights/biases: same block for every grid step -> VMEM-resident.
    # (pipeline_mode=pl.Buffered(1) would save <100 KB of redundant
    #  double-buffering; skipped on purpose — VMEM is not binding anywhere.)
    resident = lambda a: pl.BlockSpec(a.shape, lambda i: (0, 0))

    out = pl.pallas_call(
        mlp_kernel,
        out_shape=jax.ShapeDtypeStruct((b_pad, OUT_PAD), jnp.float32),
        grid=(b_pad // tb,),
        in_specs=[pl.BlockSpec((tb, IN_PAD), lambda i: (i, 0)),
                  resident(w1), resident(b1),
                  resident(w2), resident(b2),
                  resident(w3), resident(b3),
                  resident(w4), resident(b4)],
        out_specs=pl.BlockSpec((tb, OUT_PAD), lambda i: (i, 0)),
        compiler_params=pltpu.CompilerParams(
            dimension_semantics=("parallel",)),
    )(xp, w1, b1, w2, b2, w3, b3, w4, b4)

    # Drop padded rows and the 7 padded output lanes (fused into the jit).
    return out[:B, 0:1]


def mlp_reference(x, params):
    """Pure-JAX f32 reference (unpadded params) for correctness checking."""
    (w1, b1), (w2, b2), (w3, b3), (w4, b4) = params
    silu = lambda v: v * jax.nn.sigmoid(v)
    h = silu(x @ w1 + b1)
    h = silu(h @ w2 + b2)
    h = silu(h @ w3 + b3)
    return h @ w4 + b4


if __name__ == "__main__":
    hidden_size = 32
    batch = 1000          # not a multiple of the tile -> exercises row padding
                          # and yields a 2-step "parallel" grid (both v7x TCs)

    key = jax.random.PRNGKey(0)
    key, kx = jax.random.split(key)
    # features: [batch, 2]  (x, y coordinate pairs as in the module's predict())
    x = jax.random.normal(kx, (batch, 2), dtype=jnp.float32)

    params = init_params(key, hidden_size)
    padded = pad_params(params)   # done once, reused for every forward call

    out = mlp_forward(x, padded, block_rows=512)
    out = jax.block_until_ready(out)

    ref = mlp_reference(x, params)
    assert out.shape == (batch, 1)
    # bf16 MXU inputs with f32 accumulation: compare against the pure-f32
    # reference with a bf16-appropriate tolerance.
    assert jnp.allclose(out, ref, atol=2e-2, rtol=2e-2), "mismatch vs reference"

    # TODO(synk): LBFGS optimizer / MSELoss training loop from the module is
    # host-side training logic, not part of the forward pass; not implemented.
    print("KERNEL_OK")
</pallas_src>

<mosaic_0001>
module attributes {stable_mosaic.version = 11 : i64} {
  func.func @mlp_kernel(%arg0: i32, %arg1: memref<504x8xf32, #tpu.memory_space<vmem>>, %arg2: memref<8x128xbf16, #tpu.memory_space<vmem>>, %arg3: memref<1x128xf32, #tpu.memory_space<vmem>>, %arg4: memref<128x128xbf16, #tpu.memory_space<vmem>>, %arg5: memref<1x128xf32, #tpu.memory_space<vmem>>, %arg6: memref<128x128xbf16, #tpu.memory_space<vmem>>, %arg7: memref<1x128xf32, #tpu.memory_space<vmem>>, %arg8: memref<128x8xbf16, #tpu.memory_space<vmem>>, %arg9: memref<1x8xf32, #tpu.memory_space<vmem>>, %arg10: memref<504x8xf32, #tpu.memory_space<vmem>>) attributes {dimension_semantics = [#tpu.dimension_semantics<parallel>], iteration_bounds = array<i64: 2>, scalar_prefetch = 0 : i64, scratch_operands = 0 : i64, tpu.core_type = #tpu.core_type<tc>, window_params = [{transform_indices = @transform_0, window_bounds = array<i64: 504, 8>}, {pipeline_mode = #tpu.pipeline_mode<synchronous>, transform_indices = @transform_1, window_bounds = array<i64: 8, 128>}, {pipeline_mode = #tpu.pipeline_mode<synchronous>, transform_indices = @transform_2, window_bounds = array<i64: 1, 128>}, {pipeline_mode = #tpu.pipeline_mode<synchronous>, transform_indices = @transform_3, window_bounds = array<i64: 128, 128>}, {pipeline_mode = #tpu.pipeline_mode<synchronous>, transform_indices = @transform_4, window_bounds = array<i64: 1, 128>}, {pipeline_mode = #tpu.pipeline_mode<synchronous>, transform_indices = @transform_5, window_bounds = array<i64: 128, 128>}, {pipeline_mode = #tpu.pipeline_mode<synchronous>, transform_indices = @transform_6, window_bounds = array<i64: 1, 128>}, {pipeline_mode = #tpu.pipeline_mode<synchronous>, transform_indices = @transform_7, window_bounds = array<i64: 128, 8>}, {pipeline_mode = #tpu.pipeline_mode<synchronous>, transform_indices = @transform_8, window_bounds = array<i64: 1, 8>}, {transform_indices = @transform_9, window_bounds = array<i64: 504, 8>}]} {
    %c0 = arith.constant 0 : index
    %c0_0 = arith.constant 0 : index
    %0 = vector.load %arg1[%c0, %c0_0] : memref<504x8xf32, #tpu.memory_space<vmem>>, vector<504x8xf32>
    %1 = arith.truncf %0 : vector<504x8xf32> to vector<504x8xbf16>
    %c0_1 = arith.constant 0 : index
    %c0_2 = arith.constant 0 : index
    %2 = vector.load %arg2[%c0_1, %c0_2] : memref<8x128xbf16, #tpu.memory_space<vmem>>, vector<8x128xbf16>
    %cst = arith.constant dense<0.000000e+00> : vector<504x128xf32>
    %3 = tpu.matmul %1, %2, %cst {dimension_numbers = #tpu.dot_dimension_numbers<[1], [0], [0], [1], [0, 0, 1, 1], [], []>} : vector<504x8xbf16>, vector<8x128xbf16>, vector<504x128xf32> -> vector<504x128xf32>
    %c0_3 = arith.constant 0 : index
    %c0_4 = arith.constant 0 : index
    %4 = vector.load %arg3[%c0_3, %c0_4] : memref<1x128xf32, #tpu.memory_space<vmem>>, vector<1x128xf32>
    %5 = vector.broadcast %4 : vector<1x128xf32> to vector<504x128xf32>
    %6 = arith.addf %3, %5 : vector<504x128xf32>
    %cst_5 = arith.constant 5.000000e-01 : f32
    %7 = vector.broadcast %cst_5 : f32 to vector<504x128xf32>
    %8 = arith.mulf %7, %6 : vector<504x128xf32>
    %cst_6 = arith.constant 5.000000e-01 : f32
    %9 = vector.broadcast %cst_6 : f32 to vector<504x128xf32>
    %10 = arith.mulf %9, %6 : vector<504x128xf32>
    %11 = math.tanh %10 : vector<504x128xf32>
    %cst_7 = arith.constant 1.000000e+00 : f32
    %12 = vector.broadcast %cst_7 : f32 to vector<504x128xf32>
    %13 = arith.addf %11, %12 : vector<504x128xf32>
    %14 = arith.mulf %8, %13 : vector<504x128xf32>
    %15 = arith.truncf %14 : vector<504x128xf32> to vector<504x128xbf16>
    %c0_8 = arith.constant 0 : index
    %c0_9 = arith.constant 0 : index
    %16 = vector.load %arg4[%c0_8, %c0_9] : memref<128x128xbf16, #tpu.memory_space<vmem>>, vector<128x128xbf16>
    %cst_10 = arith.constant dense<0.000000e+00> : vector<504x128xf32>
    %17 = tpu.matmul %15, %16, %cst_10 {dimension_numbers = #tpu.dot_dimension_numbers<[1], [0], [0], [1], [0, 0, 1, 1], [], []>} : vector<504x128xbf16>, vector<128x128xbf16>, vector<504x128xf32> -> vector<504x128xf32>
    %c0_11 = arith.constant 0 : index
    %c0_12 = arith.constant 0 : index
    %18 = vector.load %arg5[%c0_11, %c0_12] : memref<1x128xf32, #tpu.memory_space<vmem>>, vector<1x128xf32>
    %19 = vector.broadcast %18 : vector<1x128xf32> to vector<504x128xf32>
    %20 = arith.addf %17, %19 : vector<504x128xf32>
    %cst_13 = arith.constant 5.000000e-01 : f32
    %21 = vector.broadcast %cst_13 : f32 to vector<504x128xf32>
    %22 = arith.mulf %21, %20 : vector<504x128xf32>
    %cst_14 = arith.constant 5.000000e-01 : f32
    %23 = vector.broadcast %cst_14 : f32 to vector<504x128xf32>
    %24 = arith.mulf %23, %20 : vector<504x128xf32>
    %25 = math.tanh %24 : vector<504x128xf32>
    %cst_15 = arith.constant 1.000000e+00 : f32
    %26 = vector.broadcast %cst_15 : f32 to vector<504x128xf32>
    %27 = arith.addf %25, %26 : vector<504x128xf32>
    %28 = arith.mulf %22, %27 : vector<504x128xf32>
    %29 = arith.truncf %28 : vector<504x128xf32> to vector<504x128xbf16>
    %c0_16 = arith.constant 0 : index
    %c0_17 = arith.constant 0 : index
    %30 = vector.load %arg6[%c0_16, %c0_17] : memref<128x128xbf16, #tpu.memory_space<vmem>>, vector<128x128xbf16>
    %cst_18 = arith.constant dense<0.000000e+00> : vector<504x128xf32>
    %31 = tpu.matmul %29, %30, %cst_18 {dimension_numbers = #tpu.dot_dimension_numbers<[1], [0], [0], [1], [0, 0, 1, 1], [], []>} : vector<504x128xbf16>, vector<128x128xbf16>, vector<504x128xf32> -> vector<504x128xf32>
    %c0_19 = arith.constant 0 : index
    %c0_20 = arith.constant 0 : index
    %32 = vector.load %arg7[%c0_19, %c0_20] : memref<1x128xf32, #tpu.memory_space<vmem>>, vector<1x128xf32>
    %33 = vector.broadcast %32 : vector<1x128xf32> to vector<504x128xf32>
    %34 = arith.addf %31, %33 : vector<504x128xf32>
    %cst_21 = arith.constant 5.000000e-01 : f32
    %35 = vector.broadcast %cst_21 : f32 to vector<504x128xf32>
    %36 = arith.mulf %35, %34 : vector<504x128xf32>
    %cst_22 = arith.constant 5.000000e-01 : f32
    %37 = vector.broadcast %cst_22 : f32 to vector<504x128xf32>
    %38 = arith.mulf %37, %34 : vector<504x128xf32>
    %39 = math.tanh %38 : vector<504x128xf32>
    %cst_23 = arith.constant 1.000000e+00 : f32
    %40 = vector.broadcast %cst_23 : f32 to vector<504x128xf32>
    %41 = arith.addf %39, %40 : vector<504x128xf32>
    %42 = arith.mulf %36, %41 : vector<504x128xf32>
    %43 = arith.truncf %42 : vector<504x128xf32> to vector<504x128xbf16>
    %c0_24 = arith.constant 0 : index
    %c0_25 = arith.constant 0 : index
    %44 = vector.load %arg8[%c0_24, %c0_25] : memref<128x8xbf16, #tpu.memory_space<vmem>>, vector<128x8xbf16>
    %cst_26 = arith.constant dense<0.000000e+00> : vector<504x8xf32>
    %45 = tpu.matmul %43, %44, %cst_26 {dimension_numbers = #tpu.dot_dimension_numbers<[1], [0], [0], [1], [0, 0, 1, 1], [], []>} : vector<504x128xbf16>, vector<128x8xbf16>, vector<504x8xf32> -> vector<504x8xf32>
    %c0_27 = arith.constant 0 : index
    %c0_28 = arith.constant 0 : index
    %46 = vector.load %arg9[%c0_27, %c0_28] : memref<1x8xf32, #tpu.memory_space<vmem>>, vector<1x8xf32>
    %47 = vector.broadcast %46 : vector<1x8xf32> to vector<504x8xf32>
    %48 = arith.addf %45, %47 : vector<504x8xf32>
    %c0_29 = arith.constant 0 : index
    %c0_30 = arith.constant 0 : index
    %49 = vector.load %arg10[%c0_29, %c0_30] : memref<504x8xf32, #tpu.memory_space<vmem>>, vector<504x8xf32>
    tpu.vector_store %arg10[%c0_29, %c0_30], %48 {strides = array<i32>} : memref<504x8xf32, #tpu.memory_space<vmem>>, vector<504x8xf32>,
    return
  }
  func.func @transform_0(%arg0: i32) -> (i32, i32) {
    %c0_i32 = arith.constant 0 : i32
    %c0_i32_0 = arith.constant 0 : i32
    return %arg0, %c0_i32 : i32, i32
  }
  func.func @transform_1(%arg0: i32) -> (i32, i32) {
    %c0_i32 = arith.constant 0 : i32
    %c0_i32_0 = arith.constant 0 : i32
    %c0_i32_1 = arith.constant 0 : i32
    return %c0_i32, %c0_i32_0 : i32, i32
  }
  func.func @transform_2(%arg0: i32) -> (i32, i32) {
    %c0_i32 = arith.constant 0 : i32
    %c0_i32_0 = arith.constant 0 : i32
    %c0_i32_1 = arith.constant 0 : i32
    return %c0_i32, %c0_i32_0 : i32, i32
  }
  func.func @transform_3(%arg0: i32) -> (i32, i32) {
    %c0_i32 = arith.constant 0 : i32
    %c0_i32_0 = arith.constant 0 : i32
    %c0_i32_1 = arith.constant 0 : i32
    return %c0_i32, %c0_i32_0 : i32, i32
  }
  func.func @transform_4(%arg0: i32) -> (i32, i32) {
    %c0_i32 = arith.constant 0 : i32
    %c0_i32_0 = arith.constant 0 : i32
    %c0_i32_1 = arith.constant 0 : i32
    return %c0_i32, %c0_i32_0 : i32, i32
  }
  func.func @transform_5(%arg0: i32) -> (i32, i32) {
    %c0_i32 = arith.constant 0 : i32
    %c0_i32_0 = arith.constant 0 : i32
    %c0_i32_1 = arith.constant 0 : i32
    return %c0_i32, %c0_i32_0 : i32, i32
  }
  func.func @transform_6(%arg0: i32) -> (i32, i32) {
    %c0_i32 = arith.constant 0 : i32
    %c0_i32_0 = arith.constant 0 : i32
    %c0_i32_1 = arith.constant 0 : i32
    return %c0_i32, %c0_i32_0 : i32, i32
  }
  func.func @transform_7(%arg0: i32) -> (i32, i32) {
    %c0_i32 = arith.constant 0 : i32
    %c0_i32_0 = arith.constant 0 : i32
    %c0_i32_1 = arith.constant 0 : i32
    return %c0_i32, %c0_i32_0 : i32, i32
  }
  func.func @transform_8(%arg0: i32) -> (i32, i32) {
    %c0_i32 = arith.constant 0 : i32
    %c0_i32_0 = arith.constant 0 : i32
    %c0_i32_1 = arith.constant 0 : i32
    return %c0_i32, %c0_i32_0 : i32, i32
  }
  func.func @transform_9(%arg0: i32) -> (i32, i32) {
    %c0_i32 = arith.constant 0 : i32
    %c0_i32_0 = arith.constant 0 : i32
    return %arg0, %c0_i32 : i32, i32
  }
}

</mosaic_0001>

<llo_original>
// kernel: mlp_forward.1
$region0: #{mlp_forward.1}
  #allocation0 [shape = 'u32[]', space=smem, size = 0x4, offset = 0x4, fixed_abs, tag = 'smem constant byte address 0x4 - core index']
  #allocation1 [shape = 'u32[72,128]{1,0:T(1,128)}', space=vmem, size = 0x9000, scoped, tag = 'internal scratch']
  %s0 = inlined_call_operand.vmem [shape: f32[1008,8], index: 0, kind: input, shape index: {}]
  %s1 = inlined_call_operand.vmem [shape: bf16[8,128], index: 1, kind: input, shape index: {}]
  %s2 = inlined_call_operand.vmem [shape: f32[1,128], index: 2, kind: input, shape index: {}]
  %s3 = inlined_call_operand.vmem [shape: bf16[128,128], index: 3, kind: input, shape index: {}]
  %s4 = inlined_call_operand.vmem [shape: f32[1,128], index: 4, kind: input, shape index: {}]
  %s5 = inlined_call_operand.vmem [shape: bf16[128,128], index: 5, kind: input, shape index: {}]
  %s6 = inlined_call_operand.vmem [shape: f32[1,128], index: 6, kind: input, shape index: {}]
  %s7 = inlined_call_operand.vmem [shape: bf16[128,8], index: 7, kind: input, shape index: {}]
  %s8 = inlined_call_operand.vmem [shape: f32[1,8], index: 8, kind: input, shape index: {}]
  %s9 = inlined_call_operand.vmem [shape: f32[1008,8], index: 9, kind: output, shape index: {}]
  %s10 = sld [smem:[#allocation0]]
  $region69: #{mlp_forward.1} parent=0
    _
  %s12 = ssub.s32 1, %s10
  %s13 = scalar_select 0, %s12, %s10
  loop: start=0, step=1, limit=4
  $region2: #{mlp_forward.1} parent=0 // loop_pre_header
    _
  $region3: #{mlp_forward.1} parent=0 // loop_header
    %s15 = sphi 0, %s19
    %p16 = scmp.ge.s32.totalorder %s15, 4
    %s25 = sphi 0, %s27
    %s28 = sphi 0, %s25
    %s29 = sphi 0, %s28
    %s45 = sphi 0, %s29
    %s49 = sphi 0, %s49
    %s51 = sphi 0, %s49
    %s52 = sphi 0, %s51
    %s66 = sphi 0, %s52
    %s70 = sphi 0, %s70
    %s72 = sphi 0, %s70
    %s73 = sphi 0, %s72
    %s87 = sphi 0, %s73
    %s91 = sphi 0, %s91
    %s93 = sphi 0, %s91
    %s94 = sphi 0, %s93
    %s108 = sphi 0, %s94
    %s112 = sphi 0, %s112
    %s114 = sphi 0, %s112
    %s115 = sphi 0, %s114
    %s129 = sphi 0, %s115
    %s133 = sphi 0, %s133
    %s135 = sphi 0, %s133
    %s136 = sphi 0, %s135
    %s150 = sphi 0, %s136
    %s154 = sphi 0, %s154
    %s156 = sphi 0, %s154
    %s157 = sphi 0, %s156
    %s171 = sphi 0, %s157
    %s175 = sphi 0, %s175
    %s177 = sphi 0, %s175
    %s178 = sphi 0, %s177
    %s192 = sphi 0, %s178
    %s196 = sphi 0, %s196
    %s198 = sphi 0, %s196
    %s199 = sphi 0, %s198
    %s213 = sphi 0, %s199
    %s219 = sphi 0, %s221
    %s222 = sphi 0, %s219
    %s223 = sphi 0, %s222
    %s239 = sphi 0, %s223
  $region4: #{mlp_forward.1} parent=0 // loop_header_branch
    %18 = sbr.rel (%p16) target = $region8
  $region5: #{mlp_forward.1} parent=0 // loop_body
    %s20 = ssub.s32 %s15, 1
    %s21 = ssub.s32 %s15, 2
    %s22 = sadd.s32 %s15, 1
    %s23 = ssub.s32 %s15, %s22
    %p24 = scmp.eq.s32.totalorder %s23, 0
    %s26 = sadd.s32 %s25, 1
    %s27 = scalar_select %p24, %s25, %s26
    %p30 = pneg %p24
    %p31 = scmp.eq.s32.totalorder %s15, 1
    %p32 = por %p30, %p31
    %p33 = scmp.ne.s32.totalorder %s25, %s28
    %p34 = scmp.eq.s32.totalorder %s15, 0
    %p35 = por %p33, %p34
    %p36 = scmp.ne.s32.totalorder %s25, %s28
    %p37 = scmp.eq.s32.totalorder %s20, 1
    %p38 = por %p36, %p37
    %p39 = scmp.ne.s32.totalorder %s28, %s29
    %p40 = scmp.eq.s32.totalorder %s20, 0
    %p41 = por %p39, %p40
    %p42 = scmp.ne.s32.totalorder %s28, %s29
    %p43 = scmp.eq.s32.totalorder %s21, 1
    %p44 = por %p42, %p43
    %p46 = scmp.ne.s32.totalorder %s29, %s45
    %p47 = scmp.eq.s32.totalorder %s21, 0
    %p48 = por %p46, %p47
    %s50 = sadd.s32 %s49, 1
    %p53 = scmp.eq.s32.totalorder %s15, 1
    %p54 = scmp.ne.s32.totalorder %s49, %s51
    %p55 = scmp.eq.s32.totalorder %s15, 0
    %p56 = por %p54, %p55
    %p57 = scmp.ne.s32.totalorder %s49, %s51
    %p58 = scmp.eq.s32.totalorder %s20, 1
    %p59 = por %p57, %p58
    %p60 = scmp.ne.s32.totalorder %s51, %s52
    %p61 = scmp.eq.s32.totalorder %s20, 0
    %p62 = por %p60, %p61
    %p63 = scmp.ne.s32.totalorder %s51, %s52
    %p64 = scmp.eq.s32.totalorder %s21, 1
    %p65 = por %p63, %p64
    %p67 = scmp.ne.s32.totalorder %s52, %s66
    %p68 = scmp.eq.s32.totalorder %s21, 0
    %p69 = por %p67, %p68
    %s71 = sadd.s32 %s70, 1
    %p74 = scmp.eq.s32.totalorder %s15, 1
    %p75 = scmp.ne.s32.totalorder %s70, %s72
    %p76 = scmp.eq.s32.totalorder %s15, 0
    %p77 = por %p75, %p76
    %p78 = scmp.ne.s32.totalorder %s70, %s72
    %p79 = scmp.eq.s32.totalorder %s20, 1
    %p80 = por %p78, %p79
    %p81 = scmp.ne.s32.totalorder %s72, %s73
    %p82 = scmp.eq.s32.totalorder %s20, 0
    %p83 = por %p81, %p82
    %p84 = scmp.ne.s32.totalorder %s72, %s73
    %p85 = scmp.eq.s32.totalorder %s21, 1
    %p86 = por %p84, %p85
    %p88 = scmp.ne.s32.totalorder %s73, %s87
    %p89 = scmp.eq.s32.totalorder %s21, 0
    %p90 = por %p88, %p89
    %s92 = sadd.s32 %s91, 1
    %p95 = scmp.eq.s32.totalorder %s15, 1
    %p96 = scmp.ne.s32.totalorder %s91, %s93
    %p97 = scmp.eq.s32.totalorder %s15, 0
    %p98 = por %p96, %p97
    %p99 = scmp.ne.s32.totalorder %s91, %s93
    %p100 = scmp.eq.s32.totalorder %s20, 1
    %p101 = por %p99, %p100
    %p102 = scmp.ne.s32.totalorder %s93, %s94
    %p103 = scmp.eq.s32.totalorder %s20, 0
    %p104 = por %p102, %p103
    %p105 = scmp.ne.s32.totalorder %s93, %s94
    %p106 = scmp.eq.s32.totalorder %s21, 1
    %p107 = por %p105, %p106
    %p109 = scmp.ne.s32.totalorder %s94, %s108
    %p110 = scmp.eq.s32.totalorder %s21, 0
    %p111 = por %p109, %p110
    %s113 = sadd.s32 %s112, 1
    %p116 = scmp.eq.s32.totalorder %s15, 1
    %p117 = scmp.ne.s32.totalorder %s112, %s114
    %p118 = scmp.eq.s32.totalorder %s15, 0
    %p119 = por %p117, %p118
    %p120 = scmp.ne.s32.totalorder %s112, %s114
    %p121 = scmp.eq.s32.totalorder %s20, 1
    %p122 = por %p120, %p121
    %p123 = scmp.ne.s32.totalorder %s114, %s115
    %p124 = scmp.eq.s32.totalorder %s20, 0
    %p125 = por %p123, %p124
    %p126 = scmp.ne.s32.totalorder %s114, %s115
    %p127 = scmp.eq.s32.totalorder %s21, 1
    %p128 = por %p126, %p127
    %p130 = scmp.ne.s32.totalorder %s115, %s129
    %p131 = scmp.eq.s32.totalorder %s21, 0
    %p132 = por %p130, %p131
    %s134 = sadd.s32 %s133, 1
    %p137 = scmp.eq.s32.totalorder %s15, 1
    %p138 = scmp.ne.s32.totalorder %s133, %s135
    %p139 = scmp.eq.s32.totalorder %s15, 0
    %p140 = por %p138, %p139
    %p141 = scmp.ne.s32.totalorder %s133, %s135
    %p142 = scmp.eq.s32.totalorder %s20, 1
    %p143 = por %p141, %p142
    %p144 = scmp.ne.s32.totalorder %s135, %s136
    %p145 = scmp.eq.s32.totalorder %s20, 0
    %p146 = por %p144, %p145
    %p147 = scmp.ne.s32.totalorder %s135, %s136
    %p148 = scmp.eq.s32.totalorder %s21, 1
    %p149 = por %p147, %p148
    %p151 = scmp.ne.s32.totalorder %s136, %s150
    %p152 = scmp.eq.s32.totalorder %s21, 0
    %p153 = por %p151, %p152
    %s155 = sadd.s32 %s154, 1
    %p158 = scmp.eq.s32.totalorder %s15, 1
    %p159 = scmp.ne.s32.totalorder %s154, %s156
    %p160 = scmp.eq.s32.totalorder %s15, 0
    %p161 = por %p159, %p160
    %p162 = scmp.ne.s32.totalorder %s154, %s156
    %p163 = scmp.eq.s32.totalorder %s20, 1
    %p164 = por %p162, %p163
    %p165 = scmp.ne.s32.totalorder %s156, %s157
    %p166 = scmp.eq.s32.totalorder %s20, 0
    %p167 = por %p165, %p166
    %p168 = scmp.ne.s32.totalorder %s156, %s157
    %p169 = scmp.eq.s32.totalorder %s21, 1
    %p170 = por %p168, %p169
    %p172 = scmp.ne.s32.totalorder %s157, %s171
    %p173 = scmp.eq.s32.totalorder %s21, 0
    %p174 = por %p172, %p173
    %s176 = sadd.s32 %s175, 1
    %p179 = scmp.eq.s32.totalorder %s15, 1
    %p180 = scmp.ne.s32.totalorder %s175, %s177
    %p181 = scmp.eq.s32.totalorder %s15, 0
    %p182 = por %p180, %p181
    %p183 = scmp.ne.s32.totalorder %s175, %s177
    %p184 = scmp.eq.s32.totalorder %s20, 1
    %p185 = por %p183, %p184
    %p186 = scmp.ne.s32.totalorder %s177, %s178
    %p187 = scmp.eq.s32.totalorder %s20, 0
    %p188 = por %p186, %p187
    %p189 = scmp.ne.s32.totalorder %s177, %s178
    %p190 = scmp.eq.s32.totalorder %s21, 1
    %p191 = por %p189, %p190
    %p193 = scmp.ne.s32.totalorder %s178, %s192
    %p194 = scmp.eq.s32.totalorder %s21, 0
    %p195 = por %p193, %p194
    %s197 = sadd.s32 %s196, 1
    %p200 = scmp.eq.s32.totalorder %s15, 1
    %p201 = scmp.ne.s32.totalorder %s196, %s198
    %p202 = scmp.eq.s32.totalorder %s15, 0
    %p203 = por %p201, %p202
    %p204 = scmp.ne.s32.totalorder %s196, %s198
    %p205 = scmp.eq.s32.totalorder %s20, 1
    %p206 = por %p204, %p205
    %p207 = scmp.ne.s32.totalorder %s198, %s199
    %p208 = scmp.eq.s32.totalorder %s20, 0
    %p209 = por %p207, %p208
    %p210 = scmp.ne.s32.totalorder %s198, %s199
    %p211 = scmp.eq.s32.totalorder %s21, 1
    %p212 = por %p210, %p211
    %p214 = scmp.ne.s32.totalorder %s199, %s213
    %p215 = scmp.eq.s32.totalorder %s21, 0
    %p216 = por %p214, %p215
    %s217 = ssub.s32 %s15, %s22
    %p218 = scmp.eq.s32.totalorder %s217, 0
    %s220 = sadd.s32 %s219, 1
    %s221 = scalar_select %p218, %s219, %s220
    %p224 = pneg %p218
    %p225 = scmp.eq.s32.totalorder %s15, 1
    %p226 = por %p224, %p225
    %p227 = scmp.ne.s32.totalorder %s219, %s222
    %p228 = scmp.eq.s32.totalorder %s15, 0
    %p229 = por %p227, %p228
    %p230 = scmp.ne.s32.totalorder %s219, %s222
    %p231 = scmp.eq.s32.totalorder %s20, 1
    %p232 = por %p230, %p231
    %p233 = scmp.ne.s32.totalorder %s222, %s223
    %p234 = scmp.eq.s32.totalorder %s20, 0
    %p235 = por %p233, %p234
    %p236 = scmp.ne.s32.totalorder %s222, %s223
    %p237 = scmp.eq.s32.totalorder %s21, 1
    %p238 = por %p236, %p237
    %p240 = scmp.ne.s32.totalorder %s223, %s239
    %p241 = scmp.eq.s32.totalorder %s21, 0
    %p242 = por %p240, %p241
    %p243 = scmp.le.s32.totalorder 1, %s15
    %p244 = scmp.lt.s32.totalorder %s15, 3
    %p245 = pnand %p243, %p244
    %p246 = pneg %p245
    // Predicated region
    $region9: #{mlp_forward.1} parent=5 // pred_check
      _
    $region10: #{mlp_forward.1} parent=5 // pred_check_branch
      %248 = sbr.rel (%p245) target = $region12
    $region11: #{mlp_forward.1} parent=5 // pred_region
      %s249 = ssub.s32 %s15, 1
      // Predicated region
      $region13: #{mlp_forward.1} parent=11 // pred_check
        %p250 = pneg %p62
      $region14: #{mlp_forward.1} parent=11 // pred_check_branch
        %252 = sbr.rel (%p250) target = $region16
      $region15: #{mlp_forward.1} parent=11 // pred_region
        _
      $region16: #{mlp_forward.1} parent=11 // pred_fallthru
        _
      // Predicated region
      $region17: #{mlp_forward.1} parent=11 // pred_check
        %p253 = pneg %p83
      $region18: #{mlp_forward.1} parent=11 // pred_check_branch
        %255 = sbr.rel (%p253) target = $region20
      $region19: #{mlp_forward.1} parent=11 // pred_region
        _
      $region20: #{mlp_forward.1} parent=11 // pred_fallthru
        _
      // Predicated region
      $region21: #{mlp_forward.1} parent=11 // pred_check
        %p256 = pneg %p104
      $region22: #{mlp_forward.1} parent=11 // pred_check_branch
        %258 = sbr.rel (%p256) target = $region24
      $region23: #{mlp_forward.1} parent=11 // pred_region
        _
      $region24: #{mlp_forward.1} parent=11 // pred_fallthru
        _
      // Predicated region
      $region25: #{mlp_forward.1} parent=11 // pred_check
        %p259 = pneg %p125
      $region26: #{mlp_forward.1} parent=11 // pred_check_branch
        %261 = sbr.rel (%p259) target = $region28
      $region27: #{mlp_forward.1} parent=11 // pred_region
        _
      $region28: #{mlp_forward.1} parent=11 // pred_fallthru
        _
      // Predicated region
      $region29: #{mlp_forward.1} parent=11 // pred_check
        %p262 = pneg %p146
      $region30: #{mlp_forward.1} parent=11 // pred_check_branch
        %264 = sbr.rel (%p262) target = $region32
      $region31: #{mlp_forward.1} parent=11 // pred_region
        _
      $region32: #{mlp_forward.1} parent=11 // pred_fallthru
        _
      // Predicated region
      $region33: #{mlp_forward.1} parent=11 // pred_check
        %p265 = pneg %p167
      $region34: #{mlp_forward.1} parent=11 // pred_check_branch
        %267 = sbr.rel (%p265) target = $region36
      $region35: #{mlp_forward.1} parent=11 // pred_region
        _
      $region36: #{mlp_forward.1} parent=11 // pred_fallthru
        _
      // Predicated region
      $region37: #{mlp_forward.1} parent=11 // pred_check
        %p268 = pneg %p188
      $region38: #{mlp_forward.1} parent=11 // pred_check_branch
        %270 = sbr.rel (%p268) target = $region40
      $region39: #{mlp_forward.1} parent=11 // pred_region
        _
      $region40: #{mlp_forward.1} parent=11 // pred_fallthru
        _
      // Predicated region
      $region41: #{mlp_forward.1} parent=11 // pred_check
        %p271 = pneg %p209
      $region42: #{mlp_forward.1} parent=11 // pred_check_branch
        %273 = sbr.rel (%p271) target = $region44
      $region43: #{mlp_forward.1} parent=11 // pred_region
        _
      $region44: #{mlp_forward.1} parent=11 // pred_fallthru
        _
    $region12: #{mlp_forward.1} parent=5 // pred_fallthru
      _
    %p274 = scmp.lt.s32.totalorder %s15, 2
    // Predicated region
    $region45: #{mlp_forward.1} parent=5 // pred_check
      %p275 = pneg %p274
    $region46: #{mlp_forward.1} parent=5 // pred_check_branch
      %277 = sbr.rel (%p275) target = $region48
    $region47: #{mlp_forward.1} parent=5 // pred_region
      // Predicated region
      $region49: #{mlp_forward.1} parent=47 // pred_check
        %p278 = pneg %p35
      $region50: #{mlp_forward.1} parent=47 // pred_check_branch
        %280 = sbr.rel (%p278) target = $region52
      $region51: #{mlp_forward.1} parent=47 // pred_region
        %s281 = smul.u32 63, %s15
        %p282 = scmp.lt.s32.totalorder %s281, 125
        %s283 = scalar_select %p282, %s281, 125
        %s284 = smul.addr %s283, 8
        %s285 = scalar_lea.vmem %s0, %s284
        %s286 = smul.u32 63, %s15
      $region52: #{mlp_forward.1} parent=47 // pred_fallthru
        _
    $region48: #{mlp_forward.1} parent=5 // pred_fallthru
      _
    %p287 = scmp.le.s32.totalorder 1, %s15
    %p288 = scmp.lt.s32.totalorder %s15, 3
    %p289 = pnand %p287, %p288
    %p290 = pneg %p289
    // Predicated region
    $region53: #{mlp_forward.1} parent=5 // pred_check
      _
    $region54: #{mlp_forward.1} parent=5 // pred_check_branch
      %292 = sbr.rel (%p289) target = $region56
    $region55: #{mlp_forward.1} parent=5 // pred_region
      %s293 = ssub.s32 %s15, 1
      %s294 = smul.u32 63, %s20
      %p295 = scmp.lt.s32.totalorder %s294, 125
      %s296 = scalar_select %p295, %s294, 125
      %s297 = smul.addr %s296, 8
      %s298 = scalar_lea.vmem %s0, %s297
      %p299 = pneg %p41
      %p300 = pneg %p38
      %p301 = pneg %p62
      %p302 = pneg %p59
      %p303 = pneg %p83
      %p304 = pneg %p80
      %p305 = pneg %p104
      %p306 = pneg %p101
      %p307 = pneg %p125
      %p308 = pneg %p122
      %p309 = pneg %p146
      %p310 = pneg %p143
      %p311 = pneg %p167
      %p312 = pneg %p164
      %p313 = pneg %p188
      %p314 = pneg %p185
      %p315 = pneg %p209
      %p316 = pneg %p206
      %p317 = pneg %p235
      %p318 = pneg %p232
      %s319 = smul.u32 63, %s20
      %p320 = scmp.lt.s32.totalorder %s319, 125
      %s321 = scalar_select %p320, %s319, 125
      %s322 = smul.addr %s321, 8
      %s323 = scalar_lea.vmem %s9, %s322
      %s324 = smul.u32 63, %s20
      %p325 = scmp.lt.s32.totalorder %s324, 125
      %s326 = scalar_select %p325, %s324, 125
      %s327 = smul.addr %s326, 8
      %s328 = scalar_lea.vmem %s0, %s327
      %s329 = smul.u32 63, %s20
      %s330 = smul.u32 63, %s20
      %p331 = scmp.lt.s32.totalorder %s330, 125
      %s332 = scalar_select %p331, %s330, 125
      %s333 = smul.addr %s332, 8
      %s334 = scalar_lea.vmem %s9, %s333
      %s335 = smul.u32 63, %s20
      %v337 = vld [vmem:[%s328] sm:$0xff]
      %v338 = vld [vmem:[%s328 + $0x8] sm:$0xff]
      %v339 = vld [vmem:[%s328 + $0x10] sm:$0xff]
      %v340 = vld [vmem:[%s328 + $0x18] sm:$0xff]
      %v341 = vld [vmem:[%s328 + $0x20] sm:$0xff]
      %v342 = vld [vmem:[%s328 + $0x28] sm:$0xff]
      %v343 = vld [vmem:[%s328 + $0x30] sm:$0xff]
      %v344 = vld [vmem:[%s328 + $0x38] sm:$0xff]
      %v345 = vld [vmem:[%s328 + $0x40] sm:$0xff]
      %v346 = vld [vmem:[%s328 + $0x48] sm:$0xff]
      %v347 = vld [vmem:[%s328 + $0x50] sm:$0xff]
      %v348 = vld [vmem:[%s328 + $0x58] sm:$0xff]
      %v349 = vld [vmem:[%s328 + $0x60] sm:$0xff]
      %v350 = vld [vmem:[%s328 + $0x68] sm:$0xff]
      %v351 = vld [vmem:[%s328 + $0x70] sm:$0xff]
      %v352 = vld [vmem:[%s328 + $0x78] sm:$0xff]
      %v353 = vld [vmem:[%s328 + $0x80] sm:$0xff]
      %v354 = vld [vmem:[%s328 + $0x88] sm:$0xff]
      %v355 = vld [vmem:[%s328 + $0x90] sm:$0xff]
      %v356 = vld [vmem:[%s328 + $0x98] sm:$0xff]
      %v357 = vld [vmem:[%s328 + $0xa0] sm:$0xff]
      %v358 = vld [vmem:[%s328 + $0xa8] sm:$0xff]
      %v359 = vld [vmem:[%s328 + $0xb0] sm:$0xff]
      %v360 = vld [vmem:[%s328 + $0xb8] sm:$0xff]
      %v361 = vld [vmem:[%s328 + $0xc0] sm:$0xff]
      %v362 = vld [vmem:[%s328 + $0xc8] sm:$0xff]
      %v363 = vld [vmem:[%s328 + $0xd0] sm:$0xff]
      %v364 = vld [vmem:[%s328 + $0xd8] sm:$0xff]
      %v365 = vld [vmem:[%s328 + $0xe0] sm:$0xff]
      %v366 = vld [vmem:[%s328 + $0xe8] sm:$0xff]
      %v367 = vld [vmem:[%s328 + $0xf0] sm:$0xff]
      %v368 = vld [vmem:[%s328 + $0xf8] sm:$0xff]
      %v369 = vld [vmem:[%s328 + $0x100] sm:$0xff]
      %v370 = vld [vmem:[%s328 + $0x108] sm:$0xff]
      %v371 = vld [vmem:[%s328 + $0x110] sm:$0xff]
      %v372 = vld [vmem:[%s328 + $0x118] sm:$0xff]
      %v373 = vld [vmem:[%s328 + $0x120] sm:$0xff]
      %v374 = vld [vmem:[%s328 + $0x128] sm:$0xff]
      %v375 = vld [vmem:[%s328 + $0x130] sm:$0xff]
      %v376 = vld [vmem:[%s328 + $0x138] sm:$0xff]
      %v377 = vld [vmem:[%s328 + $0x140] sm:$0xff]
      %v378 = vld [vmem:[%s328 + $0x148] sm:$0xff]
      %v379 = vld [vmem:[%s328 + $0x150] sm:$0xff]
      %v380 = vld [vmem:[%s328 + $0x158] sm:$0xff]
      %v381 = vld [vmem:[%s328 + $0x160] sm:$0xff]
      %v382 = vld [vmem:[%s328 + $0x168] sm:$0xff]
      %v383 = vld [vmem:[%s328 + $0x170] sm:$0xff]
      %v384 = vld [vmem:[%s328 + $0x178] sm:$0xff]
      %v385 = vld [vmem:[%s328 + $0x180] sm:$0xff]
      %v386 = vld [vmem:[%s328 + $0x188] sm:$0xff]
      %v387 = vld [vmem:[%s328 + $0x190] sm:$0xff]
      %v388 = vld [vmem:[%s328 + $0x198] sm:$0xff]
      %v389 = vld [vmem:[%s328 + $0x1a0] sm:$0xff]
      %v390 = vld [vmem:[%s328 + $0x1a8] sm:$0xff]
      %v391 = vld [vmem:[%s328 + $0x1b0] sm:$0xff]
      %v392 = vld [vmem:[%s328 + $0x1b8] sm:$0xff]
      %v393 = vld [vmem:[%s328 + $0x1c0] sm:$0xff]
      %v394 = vld [vmem:[%s328 + $0x1c8] sm:$0xff]
      %v395 = vld [vmem:[%s328 + $0x1d0] sm:$0xff]
      %v396 = vld [vmem:[%s328 + $0x1d8] sm:$0xff]
      %v397 = vld [vmem:[%s328 + $0x1e0] sm:$0xff]
      %v398 = vld [vmem:[%s328 + $0x1e8] sm:$0xff]
      %v399 = vld [vmem:[%s328 + $0x1f0] sm:$0xff]
      %v400 = vpack.c.bf16 %v338, %v337
      %v401 = vpack.c.bf16 %v340, %v339
      %v402 = vpack.c.bf16 %v342, %v341
      %v403 = vpack.c.bf16 %v344, %v343
      %v404 = vpack.c.bf16 %v346, %v345
      %v405 = vpack.c.bf16 %v348, %v347
      %v406 = vpack.c.bf16 %v350, %v349
      %v407 = vpack.c.bf16 %v352, %v351
      %v408 = vpack.c.bf16 %v354, %v353
      %v409 = vpack.c.bf16 %v356, %v355
      %v410 = vpack.c.bf16 %v358, %v357
      %v411 = vpack.c.bf16 %v360, %v359
      %v412 = vpack.c.bf16 %v362, %v361
      %v413 = vpack.c.bf16 %v364, %v363
      %v414 = vpack.c.bf16 %v366, %v365
      %v415 = vpack.c.bf16 %v368, %v367
      %v416 = vpack.c.bf16 %v370, %v369
      %v417 = vpack.c.bf16 %v372, %v371
      %v418 = vpack.c.bf16 %v374, %v373
      %v419 = vpack.c.bf16 %v376, %v375
      %v420 = vpack.c.bf16 %v378, %v377
      %v421 = vpack.c.bf16 %v380, %v379
      %v422 = vpack.c.bf16 %v382, %v381
      %v423 = vpack.c.bf16 %v384, %v383
      %v424 = vpack.c.bf16 %v386, %v385
      %v425 = vpack.c.bf16 %v388, %v387
      %v426 = vpack.c.bf16 %v390, %v389
      %v427 = vpack.c.bf16 %v392, %v391
      %v428 = vpack.c.bf16 %v394, %v393
      %v429 = vpack.c.bf16 %v396, %v395
      %v430 = vpack.c.bf16 %v398, %v397
      %v431 = vpack.c.bf16 %v399, %v399
      %v432 = vld [vmem:[%s1] sm:$0xf]
      %v433 = vld [vmem:[%s2] sm:$0x1]
      %v435 = vperm.slane %v433, 0
      %vm437 = vcmask 64512
      %v439 = vsel %vm437, %v400, 0
      %v442 = vsel %vm437, %v401, 0
      %v445 = vsel %vm437, %v402, 0
      %v448 = vsel %vm437, %v403, 0
      %v451 = vsel %vm437, %v404, 0
      %v454 = vsel %vm437, %v405, 0
      %v457 = vsel %vm437, %v406, 0
      %v460 = vsel %vm437, %v407, 0
      %v463 = vsel %vm437, %v408, 0
      %v466 = vsel %vm437, %v409, 0
      %v469 = vsel %vm437, %v410, 0
      %v472 = vsel %vm437, %v411, 0
      %v475 = vsel %vm437, %v412, 0
      %v478 = vsel %vm437, %v413, 0
      %v481 = vsel %vm437, %v414, 0
      %v484 = vsel %vm437, %v415, 0
      %v487 = vsel %vm437, %v416, 0
      %v490 = vsel %vm437, %v417, 0
      %v493 = vsel %vm437, %v418, 0
      %v496 = vsel %vm437, %v419, 0
      %v499 = vsel %vm437, %v420, 0
      %v502 = vsel %vm437, %v421, 0
      %v505 = vsel %vm437, %v422, 0
      %v508 = vsel %vm437, %v423, 0
      %v511 = vsel %vm437, %v424, 0
      %v514 = vsel %vm437, %v425, 0
      %v517 = vsel %vm437, %v426, 0
      %v520 = vsel %vm437, %v427, 0
      %v523 = vsel %vm437, %v428, 0
      %v526 = vsel %vm437, %v429, 0
      %v529 = vsel %vm437, %v430, 0
      %v532 = vsel %vm437, %v431, 0
      %vm534 = vcmask 1043456
      %v536 = vsel %vm534, %v432, 0
      %538 = vmatpush.bf16.msra.mxu0 0
      %539 = vmatpush.bf16.msra.mxu0 0
      %540 = vmatpush.bf16.msra.mxu0 0
      %541 = vmatpush.bf16.msra.mxu0 0
      %542 = vmatpush.bf16.msra.mxu0 0
      %543 = vmatpush.bf16.msra.mxu0 0
      %544 = vmatpush.bf16.msra.mxu0 0
      %545 = vmatpush.bf16.msra.mxu0 %v536
      %546 = vmatmul.bf16.gmra.mxu0 %v439
      %v547 = vpop.f32.mrf.mxu0
      %v548 = vadd.f32 %v435, %v547
      %v549 = vpop.f32.mrf.mxu0
      %v550 = vadd.f32 %v435, %v549
      %551 = vmatmul.bf16.gmra.mxu0 %v442
      %v552 = vpop.f32.mrf.mxu0
      %v553 = vadd.f32 %v435, %v552
      %v554 = vpop.f32.mrf.mxu0
      %v555 = vadd.f32 %v435, %v554
      %556 = vmatmul.bf16.gmra.mxu0 %v445
      %v557 = vpop.f32.mrf.mxu0
      %v558 = vadd.f32 %v435, %v557
      %v559 = vpop.f32.mrf.mxu0
      %v560 = vadd.f32 %v435, %v559
      %561 = vmatmul.bf16.gmra.mxu0 %v448
      %v562 = vpop.f32.mrf.mxu0
      %v563 = vadd.f32 %v435, %v562
      %v564 = vpop.f32.mrf.mxu0
      %v565 = vadd.f32 %v435, %v564
      %566 = vmatmul.bf16.gmra.mxu0 %v451
      %v567 = vpop.f32.mrf.mxu0
      %v568 = vadd.f32 %v435, %v567
      %v569 = vpop.f32.mrf.mxu0
      %v570 = vadd.f32 %v435, %v569
      %571 = vmatmul.bf16.gmra.mxu0 %v454
      %v572 = vpop.f32.mrf.mxu0
      %v573 = vadd.f32 %v435, %v572
      %v574 = vpop.f32.mrf.mxu0
      %v575 = vadd.f32 %v435, %v574
      %576 = vmatmul.bf16.gmra.mxu0 %v457
      %v577 = vpop.f32.mrf.mxu0
      %v578 = vadd.f32 %v435, %v577
      %v579 = vpop.f32.mrf.mxu0
      %v580 = vadd.f32 %v435, %v579
      %581 = vmatmul.bf16.gmra.mxu0 %v460
      %v582 = vpop.f32.mrf.mxu0
      %v583 = vadd.f32 %v435, %v582
      %v584 = vpop.f32.mrf.mxu0
      %v585 = vadd.f32 %v435, %v584
      %586 = vmatmul.bf16.gmra.mxu0 %v463
      %v587 = vpop.f32.mrf.mxu0
      %v588 = vadd.f32 %v435, %v587
      %v589 = vpop.f32.mrf.mxu0
      %v590 = vadd.f32 %v435, %v589
      %591 = vmatmul.bf16.gmra.mxu0 %v466
      %v592 = vpop.f32.mrf.mxu0
      %v593 = vadd.f32 %v435, %v592
      %v594 = vpop.f32.mrf.mxu0
      %v595 = vadd.f32 %v435, %v594
      %596 = vmatmul.bf16.gmra.mxu0 %v469
      %v597 = vpop.f32.mrf.mxu0
      %v598 = vadd.f32 %v435, %v597
      %v599 = vpop.f32.mrf.mxu0
      %v600 = vadd.f32 %v435, %v599
      %601 = vmatmul.bf16.gmra.mxu0 %v472
      %v602 = vpop.f32.mrf.mxu0
      %v603 = vadd.f32 %v435, %v602
      %v604 = vpop.f32.mrf.mxu0
      %v605 = vadd.f32 %v435, %v604
      %606 = vmatmul.bf16.gmra.mxu0 %v475
      %v607 = vpop.f32.mrf.mxu0
      %v608 = vadd.f32 %v435, %v607
      %v609 = vpop.f32.mrf.mxu0
      %v610 = vadd.f32 %v435, %v609
      %611 = vmatmul.bf16.gmra.mxu0 %v478
      %v612 = vpop.f32.mrf.mxu0
      %v613 = vadd.f32 %v435, %v612
      %v614 = vpop.f32.mrf.mxu0
      %v615 = vadd.f32 %v435, %v614
      %616 = vmatmul.bf16.gmra.mxu0 %v481
      %v617 = vpop.f32.mrf.mxu0
      %v618 = vadd.f32 %v435, %v617
      %v619 = vpop.f32.mrf.mxu0
      %v620 = vadd.f32 %v435, %v619
      %621 = vmatmul.bf16.gmra.mxu0 %v484
      %v622 = vpop.f32.mrf.mxu0
      %v623 = vadd.f32 %v435, %v622
      %v624 = vpop.f32.mrf.mxu0
      %v625 = vadd.f32 %v435, %v624
      %626 = vmatmul.bf16.gmra.mxu0 %v487
      %v627 = vpop.f32.mrf.mxu0
      %v628 = vadd.f32 %v435, %v627
      %v629 = vpop.f32.mrf.mxu0
      %v630 = vadd.f32 %v435, %v629
      %631 = vmatmul.bf16.gmra.mxu0 %v490
      %v632 = vpop.f32.mrf.mxu0
      %v633 = vadd.f32 %v435, %v632
      %v634 = vpop.f32.mrf.mxu0
      %v635 = vadd.f32 %v435, %v634
      %636 = vmatmul.bf16.gmra.mxu0 %v493
      %v637 = vpop.f32.mrf.mxu0
      %v638 = vadd.f32 %v435, %v637
      %v639 = vpop.f32.mrf.mxu0
      %v640 = vadd.f32 %v435, %v639
      %641 = vmatmul.bf16.gmra.mxu0 %v496
      %v642 = vpop.f32.mrf.mxu0
      %v643 = vadd.f32 %v435, %v642
      %v644 = vpop.f32.mrf.mxu0
      %v645 = vadd.f32 %v435, %v644
      %646 = vmatmul.bf16.gmra.mxu0 %v499
      %v647 = vpop.f32.mrf.mxu0
      %v648 = vadd.f32 %v435, %v647
      %v649 = vpop.f32.mrf.mxu0
      %v650 = vadd.f32 %v435, %v649
      %651 = vmatmul.bf16.gmra.mxu0 %v502
      %v652 = vpop.f32.mrf.mxu0
      %v653 = vadd.f32 %v435, %v652
      %v654 = vpop.f32.mrf.mxu0
      %v655 = vadd.f32 %v435, %v654
      %656 = vmatmul.bf16.gmra.mxu0 %v505
      %v657 = vpop.f32.mrf.mxu0
      %v658 = vadd.f32 %v435, %v657
      %v659 = vpop.f32.mrf.mxu0
      %v660 = vadd.f32 %v435, %v659
      %661 = vmatmul.bf16.gmra.mxu0 %v508
      %v662 = vpop.f32.mrf.mxu0
      %v663 = vadd.f32 %v435, %v662
      %v664 = vpop.f32.mrf.mxu0
      %v665 = vadd.f32 %v435, %v664
      %666 = vmatmul.bf16.gmra.mxu0 %v511
      %v667 = vpop.f32.mrf.mxu0
      %v668 = vadd.f32 %v435, %v667
      %v669 = vpop.f32.mrf.mxu0
      %v670 = vadd.f32 %v435, %v669
      %671 = vmatmul.bf16.gmra.mxu0 %v514
      %v672 = vpop.f32.mrf.mxu0
      %v673 = vadd.f32 %v435, %v672
      %v674 = vpop.f32.mrf.mxu0
      %v675 = vadd.f32 %v435, %v674
      %676 = vmatmul.bf16.gmra.mxu0 %v517
      %v677 = vpop.f32.mrf.mxu0
      %v678 = vadd.f32 %v435, %v677
      %v679 = vpop.f32.mrf.mxu0
      %v680 = vadd.f32 %v435, %v679
      %681 = vmatmul.bf16.gmra.mxu0 %v520
      %v682 = vpop.f32.mrf.mxu0
      %v683 = vadd.f32 %v435, %v682
      %v684 = vpop.f32.mrf.mxu0
      %v685 = vadd.f32 %v435, %v684
      %686 = vmatmul.bf16.gmra.mxu0 %v523
      %v687 = vpop.f32.mrf.mxu0
      %v688 = vadd.f32 %v435, %v687
      %v689 = vpop.f32.mrf.mxu0
      %v690 = vadd.f32 %v435, %v689
      %691 = vmatmul.bf16.gmra.mxu0 %v526
      %v692 = vpop.f32.mrf.mxu0
      %v693 = vadd.f32 %v435, %v692
      %v694 = vpop.f32.mrf.mxu0
      %v695 = vadd.f32 %v435, %v694
      %696 = vmatmul.bf16.gmra.mxu0 %v529
      %v697 = vpop.f32.mrf.mxu0
      %v698 = vadd.f32 %v435, %v697
      %v699 = vpop.f32.mrf.mxu0
      %v700 = vadd.f32 %v435, %v699
      %701 = vmatmul.bf16.gmra.mxu0 %v532
      %v702 = vpop.f32.mrf.mxu0
      %v703 = vadd.f32 %v435, %v702
      %v704 = vpop.f32.mrf.mxu0
      %705 = vdwg.mxu0
      %v706 = vmul.f32 %v548, 0.5
      %v707 = vmul.f32 %v550, 0.5
      %v708 = vmul.f32 %v553, 0.5
      %v709 = vmul.f32 %v555, 0.5
      %v710 = vmul.f32 %v558, 0.5
      %v711 = vmul.f32 %v560, 0.5
      %v712 = vmul.f32 %v563, 0.5
      %v713 = vmul.f32 %v565, 0.5
      %v714 = vmul.f32 %v568, 0.5
      %v715 = vmul.f32 %v570, 0.5
      %v716 = vmul.f32 %v573, 0.5
      %v717 = vmul.f32 %v575, 0.5
      %v718 = vmul.f32 %v578, 0.5
      %v719 = vmul.f32 %v580, 0.5
      %v720 = vmul.f32 %v583, 0.5
      %v721 = vmul.f32 %v585, 0.5
      %v722 = vmul.f32 %v588, 0.5
      %v723 = vmul.f32 %v590, 0.5
      %v724 = vmul.f32 %v593, 0.5
      %v725 = vmul.f32 %v595, 0.5
      %v726 = vmul.f32 %v598, 0.5
      %v727 = vmul.f32 %v600, 0.5
      %v728 = vmul.f32 %v603, 0.5
      %v729 = vmul.f32 %v605, 0.5
      %v730 = vmul.f32 %v608, 0.5
      %v731 = vmul.f32 %v610, 0.5
      %v732 = vmul.f32 %v613, 0.5
      %v733 = vmul.f32 %v615, 0.5
      %v734 = vmul.f32 %v618, 0.5
      %v735 = vmul.f32 %v620, 0.5
      %v736 = vmul.f32 %v623, 0.5
      %v737 = vmul.f32 %v625, 0.5
      %v738 = vmul.f32 %v628, 0.5
      %v739 = vmul.f32 %v630, 0.5
      %v740 = vmul.f32 %v633, 0.5
      %v741 = vmul.f32 %v635, 0.5
      %v742 = vmul.f32 %v638, 0.5
      %v743 = vmul.f32 %v640, 0.5
      %v744 = vmul.f32 %v643, 0.5
      %v745 = vmul.f32 %v645, 0.5
      %v746 = vmul.f32 %v648, 0.5
      %v747 = vmul.f32 %v650, 0.5
      %v748 = vmul.f32 %v653, 0.5
      %v749 = vmul.f32 %v655, 0.5
      %v750 = vmul.f32 %v658, 0.5
      %v751 = vmul.f32 %v660, 0.5
      %v752 = vmul.f32 %v663, 0.5
      %v753 = vmul.f32 %v665, 0.5
      %v754 = vmul.f32 %v668, 0.5
      %v755 = vmul.f32 %v670, 0.5
      %v756 = vmul.f32 %v673, 0.5
      %v757 = vmul.f32 %v675, 0.5
      %v758 = vmul.f32 %v678, 0.5
      %v759 = vmul.f32 %v680, 0.5
      %v760 = vmul.f32 %v683, 0.5
      %v761 = vmul.f32 %v685, 0.5
      %v762 = vmul.f32 %v688, 0.5
      %v763 = vmul.f32 %v690, 0.5
      %v764 = vmul.f32 %v693, 0.5
      %v765 = vmul.f32 %v695, 0.5
      %v766 = vmul.f32 %v698, 0.5
      %v767 = vmul.f32 %v700, 0.5
      %v768 = vmul.f32 %v703, 0.5
      %v769 = vtanh.pop %v706
      %v770 = vtanh.pop %v707
      %v771 = vtanh.pop %v708
      %v772 = vtanh.pop %v709
      %v773 = vtanh.pop %v710
      %v774 = vtanh.pop %v711
      %v775 = vtanh.pop %v712
      %v776 = vtanh.pop %v713
      %v777 = vtanh.pop %v714
      %v778 = vtanh.pop %v715
      %v779 = vtanh.pop %v716
      %v780 = vtanh.pop %v717
      %v781 = vtanh.pop %v718
      %v782 = vtanh.pop %v719
      %v783 = vtanh.pop %v720
      %v784 = vtanh.pop %v721
      %v785 = vtanh.pop %v722
      %v786 = vtanh.pop %v723
      %v787 = vtanh.pop %v724
      %v788 = vtanh.pop %v725
      %v789 = vtanh.pop %v726
      %v790 = vtanh.pop %v727
      %v791 = vtanh.pop %v728
      %v792 = vtanh.pop %v729
      %v793 = vtanh.pop %v730
      %v794 = vtanh.pop %v731
      %v795 = vtanh.pop %v732
      %v796 = vtanh.pop %v733
      %v797 = vtanh.pop %v734
      %v798 = vtanh.pop %v735
      %v799 = vtanh.pop %v736
      %v800 = vtanh.pop %v737
      %v801 = vtanh.pop %v738
      %v802 = vtanh.pop %v739
      %v803 = vtanh.pop %v740
      %v804 = vtanh.pop %v741
      %v805 = vtanh.pop %v742
      %v806 = vtanh.pop %v743
      %v807 = vtanh.pop %v744
      %v808 = vtanh.pop %v745
      %v809 = vtanh.pop %v746
      %v810 = vtanh.pop %v747
      %v811 = vtanh.pop %v748
      %v812 = vtanh.pop %v749
      %v813 = vtanh.pop %v750
      %v814 = vtanh.pop %v751
      %v815 = vtanh.pop %v752
      %v816 = vtanh.pop %v753
      %v817 = vtanh.pop %v754
      %v818 = vtanh.pop %v755
      %v819 = vtanh.pop %v756
      %v820 = vtanh.pop %v757
      %v821 = vtanh.pop %v758
      %v822 = vtanh.pop %v759
      %v823 = vtanh.pop %v760
      %v824 = vtanh.pop %v761
      %v825 = vtanh.pop %v762
      %v826 = vtanh.pop %v763
      %v827 = vtanh.pop %v764
      %v828 = vtanh.pop %v765
      %v829 = vtanh.pop %v766
      %v830 = vtanh.pop %v767
      %v831 = vtanh.pop %v768
      %v832 = vadd.f32 %v769, 1.0
      %v833 = vadd.f32 %v770, 1.0
      %v834 = vadd.f32 %v771, 1.0
      %v835 = vadd.f32 %v772, 1.0
      %v836 = vadd.f32 %v773, 1.0
      %v837 = vadd.f32 %v774, 1.0
      %v838 = vadd.f32 %v775, 1.0
      %v839 = vadd.f32 %v776, 1.0
      %v840 = vadd.f32 %v777, 1.0
      %v841 = vadd.f32 %v778, 1.0
      %v842 = vadd.f32 %v779, 1.0
      %v843 = vadd.f32 %v780, 1.0
      %v844 = vadd.f32 %v781, 1.0
      %v845 = vadd.f32 %v782, 1.0
      %v846 = vadd.f32 %v783, 1.0
      %v847 = vadd.f32 %v784, 1.0
      %v848 = vadd.f32 %v785, 1.0
      %v849 = vadd.f32 %v786, 1.0
      %v850 = vadd.f32 %v787, 1.0
      %v851 = vadd.f32 %v788, 1.0
      %v852 = vadd.f32 %v789, 1.0
      %v853 = vadd.f32 %v790, 1.0
      %v854 = vadd.f32 %v791, 1.0
      %v855 = vadd.f32 %v792, 1.0
      %v856 = vadd.f32 %v793, 1.0
      %v857 = vadd.f32 %v794, 1.0
      %v858 = vadd.f32 %v795, 1.0
      %v859 = vadd.f32 %v796, 1.0
      %v860 = vadd.f32 %v797, 1.0
      %v861 = vadd.f32 %v798, 1.0
      %v862 = vadd.f32 %v799, 1.0
      %v863 = vadd.f32 %v800, 1.0
      %v864 = vadd.f32 %v801, 1.0
      %v865 = vadd.f32 %v802, 1.0
      %v866 = vadd.f32 %v803, 1.0
      %v867 = vadd.f32 %v804, 1.0
      %v868 = vadd.f32 %v805, 1.0
      %v869 = vadd.f32 %v806, 1.0
      %v870 = vadd.f32 %v807, 1.0
      %v871 = vadd.f32 %v808, 1.0
      %v872 = vadd.f32 %v809, 1.0
      %v873 = vadd.f32 %v810, 1.0
      %v874 = vadd.f32 %v811, 1.0
      %v875 = vadd.f32 %v812, 1.0
      %v876 = vadd.f32 %v813, 1.0
      %v877 = vadd.f32 %v814, 1.0
      %v878 = vadd.f32 %v815, 1.0
      %v879 = vadd.f32 %v816, 1.0
      %v880 = vadd.f32 %v817, 1.0
      %v881 = vadd.f32 %v818, 1.0
      %v882 = vadd.f32 %v819, 1.0
      %v883 = vadd.f32 %v820, 1.0
      %v884 = vadd.f32 %v821, 1.0
      %v885 = vadd.f32 %v822, 1.0
      %v886 = vadd.f32 %v823, 1.0
      %v887 = vadd.f32 %v824, 1.0
      %v888 = vadd.f32 %v825, 1.0
      %v889 = vadd.f32 %v826, 1.0
      %v890 = vadd.f32 %v827, 1.0
      %v891 = vadd.f32 %v828, 1.0
      %v892 = vadd.f32 %v829, 1.0
      %v893 = vadd.f32 %v830, 1.0
      %v894 = vadd.f32 %v831, 1.0
      %v895 = vmul.f32 %v706, %v832
      %v896 = vmul.f32 %v707, %v833
      %v897 = vmul.f32 %v708, %v834
      %v898 = vmul.f32 %v709, %v835
      %v899 = vmul.f32 %v710, %v836
      %v900 = vmul.f32 %v711, %v837
      %v901 = vmul.f32 %v712, %v838
      %v902 = vmul.f32 %v713, %v839
      %v903 = vmul.f32 %v714, %v840
      %v904 = vmul.f32 %v715, %v841
      %v905 = vmul.f32 %v716, %v842
      %v906 = vmul.f32 %v717, %v843
      %v907 = vmul.f32 %v718, %v844
      %v908 = vmul.f32 %v719, %v845
      %v909 = vmul.f32 %v720, %v846
      %v910 = vmul.f32 %v721, %v847
      %v911 = vmul.f32 %v722, %v848
      %v912 = vmul.f32 %v723, %v849
      %v913 = vmul.f32 %v724, %v850
      %v914 = vmul.f32 %v725, %v851
      %v915 = vmul.f32 %v726, %v852
      %v916 = vmul.f32 %v727, %v853
      %v917 = vmul.f32 %v728, %v854
      %v918 = vmul.f32 %v729, %v855
      %v919 = vmul.f32 %v730, %v856
      %v920 = vmul.f32 %v731, %v857
      %v921 = vmul.f32 %v732, %v858
      %v922 = vmul.f32 %v733, %v859
      %v923 = vmul.f32 %v734, %v860
      %v924 = vmul.f32 %v735, %v861
      %v925 = vmul.f32 %v736, %v862
      %v926 = vmul.f32 %v737, %v863
      %v927 = vmul.f32 %v738, %v864
      %v928 = vmul.f32 %v739, %v865
      %v929 = vmul.f32 %v740, %v866
      %v930 = vmul.f32 %v741, %v867
      %v931 = vmul.f32 %v742, %v868
      %v932 = vmul.f32 %v743, %v869
      %v933 = vmul.f32 %v744, %v870
      %v934 = vmul.f32 %v745, %v871
      %v935 = vmul.f32 %v746, %v872
      %v936 = vmul.f32 %v747, %v873
      %v937 = vmul.f32 %v748, %v874
      %v938 = vmul.f32 %v749, %v875
      %v939 = vmul.f32 %v750, %v876
      %v940 = vmul.f32 %v751, %v877
      %v941 = vmul.f32 %v752, %v878
      %v942 = vmul.f32 %v753, %v879
      %v943 = vmul.f32 %v754, %v880
      %v944 = vmul.f32 %v755, %v881
      %v945 = vmul.f32 %v756, %v882
      %v946 = vmul.f32 %v757, %v883
      %v947 = vmul.f32 %v758, %v884
      %v948 = vmul.f32 %v759, %v885
      %v949 = vmul.f32 %v760, %v886
      %v950 = vmul.f32 %v761, %v887
      %v951 = vmul.f32 %v762, %v888
      %v952 = vmul.f32 %v763, %v889
      %v953 = vmul.f32 %v764, %v890
      %v954 = vmul.f32 %v765, %v891
      %v955 = vmul.f32 %v766, %v892
      %v956 = vmul.f32 %v767, %v893
      %v957 = vmul.f32 %v768, %v894
      %v958 = vpack.c.bf16 %v896, %v895
      %v959 = vpack.c.bf16 %v898, %v897
      %v960 = vpack.c.bf16 %v900, %v899
      %v961 = vpack.c.bf16 %v902, %v901
      %v962 = vpack.c.bf16 %v904, %v903
      %v963 = vpack.c.bf16 %v906, %v905
      %v964 = vpack.c.bf16 %v908, %v907
      %v965 = vpack.c.bf16 %v910, %v909
      %v966 = vpack.c.bf16 %v912, %v911
      %v967 = vpack.c.bf16 %v914, %v913
      %v968 = vpack.c.bf16 %v916, %v915
      %v969 = vpack.c.bf16 %v918, %v917
      %v970 = vpack.c.bf16 %v920, %v919
      %v971 = vpack.c.bf16 %v922, %v921
      %v972 = vpack.c.bf16 %v924, %v923
      %v973 = vpack.c.bf16 %v926, %v925
      %v974 = vpack.c.bf16 %v928, %v927
      %v975 = vpack.c.bf16 %v930, %v929
      %v976 = vpack.c.bf16 %v932, %v931
      %v977 = vpack.c.bf16 %v934, %v933
      %v978 = vpack.c.bf16 %v936, %v935
      %v979 = vpack.c.bf16 %v938, %v937
      %v980 = vpack.c.bf16 %v940, %v939
      %v981 = vpack.c.bf16 %v942, %v941
      %v982 = vpack.c.bf16 %v944, %v943
      %v983 = vpack.c.bf16 %v946, %v945
      %v984 = vpack.c.bf16 %v948, %v947
      %v985 = vpack.c.bf16 %v950, %v949
      %v986 = vpack.c.bf16 %v952, %v951
      %v987 = vpack.c.bf16 %v954, %v953
      %v988 = vpack.c.bf16 %v956, %v955
      %v989 = vpack.c.bf16 %v957, %v957
      %v990 = vld [vmem:[%s3] sm:$0xf]
      %v991 = vld [vmem:[%s3 + $0x4] sm:$0xf]
      %v992 = vld [vmem:[%s3 + $0x8] sm:$0xf]
      %v993 = vld [vmem:[%s3 + $0xc] sm:$0xf]
      %v994 = vld [vmem:[%s3 + $0x10] sm:$0xf]
      %v995 = vld [vmem:[%s3 + $0x14] sm:$0xf]
      %v996 = vld [vmem:[%s3 + $0x18] sm:$0xf]
      %v997 = vld [vmem:[%s3 + $0x1c] sm:$0xf]
      %v998 = vld [vmem:[%s3 + $0x20] sm:$0xf]
      %v999 = vld [vmem:[%s3 + $0x24] sm:$0xf]
      %v1000 = vld [vmem:[%s3 + $0x28] sm:$0xf]
      %v1001 = vld [vmem:[%s3 + $0x2c] sm:$0xf]
      %v1002 = vld [vmem:[%s3 + $0x30] sm:$0xf]
      %v1003 = vld [vmem:[%s3 + $0x34] sm:$0xf]
      %v1004 = vld [vmem:[%s3 + $0x38] sm:$0xf]
      %v1005 = vld [vmem:[%s3 + $0x3c] sm:$0xf]
      %v1006 = vld [vmem:[%s4] sm:$0x1]
      %v1008 = vperm.slane %v1006, 0
      %v1026 = vunpack.c.l.b16 %v990
      %v1027 = vunpack.c.l.b16 %v991
      %v1028 = vunpack.c.l.b16 %v992
      %v1029 = vunpack.c.l.b16 %v993
      %v1030 = vunpack.c.l.b16 %v994
      %v1031 = vunpack.c.l.b16 %v995
      %v1032 = vunpack.c.l.b16 %v996
      %v1033 = vunpack.c.l.b16 %v997
      %v1034 = vunpack.c.l.b16 %v998
      %v1035 = vunpack.c.l.b16 %v999
      %v1036 = vunpack.c.l.b16 %v1000
      %v1037 = vunpack.c.l.b16 %v1001
      %v1038 = vunpack.c.l.b16 %v1002
      %v1039 = vunpack.c.l.b16 %v1003
      %v1040 = vunpack.c.l.b16 %v1004
      %v1041 = vunpack.c.l.b16 %v1005
      %v1042 = vpack.c.b16 %v1027, %v1026
      %v1043 = vpack.c.b16 %v1029, %v1028
      %v1044 = vpack.c.b16 %v1031, %v1030
      %v1045 = vpack.c.b16 %v1033, %v1032
      %v1046 = vpack.c.b16 %v1035, %v1034
      %v1047 = vpack.c.b16 %v1037, %v1036
      %v1048 = vpack.c.b16 %v1039, %v1038
      %v1049 = vpack.c.b16 %v1041, %v1040
      %1058 = vmatpush.bf16.msra.mxu0 %v1049
      %1059 = vmatpush.bf16.msra.mxu0 %v1048
      %1060 = vmatpush.bf16.msra.mxu0 %v1047
      %1061 = vmatpush.bf16.msra.mxu0 %v1046
      %1062 = vmatpush.bf16.msra.mxu0 %v1045
      %1063 = vmatpush.bf16.msra.mxu0 %v1044
      %1064 = vmatpush.bf16.msra.mxu0 %v1043
      %1065 = vmatpush.bf16.msra.mxu0 %v1042
      %1066 = vmatmul.bf16.gmra.mxu0 %v958
      %v1067 = vpop.f32.mrf.mxu0
      %v1068 = vadd.f32 %v1008, %v1067
      %v1069 = vpop.f32.mrf.mxu0
      %v1070 = vadd.f32 %v1008, %v1069
      %1071 = vmatmul.bf16.gmra.mxu0 %v959
      %v1072 = vpop.f32.mrf.mxu0
      %v1073 = vadd.f32 %v1008, %v1072
      %v1074 = vpop.f32.mrf.mxu0
      %v1075 = vadd.f32 %v1008, %v1074
      %1076 = vmatmul.bf16.gmra.mxu0 %v960
      %v1077 = vpop.f32.mrf.mxu0
      %v1078 = vadd.f32 %v1008, %v1077
      %v1079 = vpop.f32.mrf.mxu0
      %v1080 = vadd.f32 %v1008, %v1079
      %1081 = vmatmul.bf16.gmra.mxu0 %v961
      %v1082 = vpop.f32.mrf.mxu0
      %v1083 = vadd.f32 %v1008, %v1082
      %v1084 = vpop.f32.mrf.mxu0
      %v1085 = vadd.f32 %v1008, %v1084
      %1086 = vmatmul.bf16.gmra.mxu0 %v962
      %v1087 = vpop.f32.mrf.mxu0
      %v1088 = vadd.f32 %v1008, %v1087
      %v1089 = vpop.f32.mrf.mxu0
      %v1090 = vadd.f32 %v1008, %v1089
      %1091 = vmatmul.bf16.gmra.mxu0 %v963
      %v1092 = vpop.f32.mrf.mxu0
      %v1093 = vadd.f32 %v1008, %v1092
      %v1094 = vpop.f32.mrf.mxu0
      %v1095 = vadd.f32 %v1008, %v1094
      %1096 = vmatmul.bf16.gmra.mxu0 %v964
      %v1097 = vpop.f32.mrf.mxu0
      %v1098 = vadd.f32 %v1008, %v1097
      %v1099 = vpop.f32.mrf.mxu0
      %v1100 = vadd.f32 %v1008, %v1099
      %1101 = vmatmul.bf16.gmra.mxu0 %v965
      %v1102 = vpop.f32.mrf.mxu0
      %v1103 = vadd.f32 %v1008, %v1102
      %v1104 = vpop.f32.mrf.mxu0
      %v1105 = vadd.f32 %v1008, %v1104
      %1106 = vmatmul.bf16.gmra.mxu0 %v966
      %v1107 = vpop.f32.mrf.mxu0
      %v1108 = vadd.f32 %v1008, %v1107
      %v1109 = vpop.f32.mrf.mxu0
      %v1110 = vadd.f32 %v1008, %v1109
      %1111 = vmatmul.bf16.gmra.mxu0 %v967
      %v1112 = vpop.f32.mrf.mxu0
      %v1113 = vadd.f32 %v1008, %v1112
      %v1114 = vpop.f32.mrf.mxu0
      %v1115 = vadd.f32 %v1008, %v1114
      %1116 = vmatmul.bf16.gmra.mxu0 %v968
      %v1117 = vpop.f32.mrf.mxu0
      %v1118 = vadd.f32 %v1008, %v1117
      %v1119 = vpop.f32.mrf.mxu0
      %v1120 = vadd.f32 %v1008, %v1119
      %1121 = vmatmul.bf16.gmra.mxu0 %v969
      %v1122 = vpop.f32.mrf.mxu0
      %v1123 = vadd.f32 %v1008, %v1122
      %v1124 = vpop.f32.mrf.mxu0
      %v1125 = vadd.f32 %v1008, %v1124
      %1126 = vmatmul.bf16.gmra.mxu0 %v970
      %v1127 = vpop.f32.mrf.mxu0
      %v1128 = vadd.f32 %v1008, %v1127
      %v1129 = vpop.f32.mrf.mxu0
      %v1130 = vadd.f32 %v1008, %v1129
      %1131 = vmatmul.bf16.gmra.mxu0 %v971
      %v1132 = vpop.f32.mrf.mxu0
      %v1133 = vadd.f32 %v1008, %v1132
      %v1134 = vpop.f32.mrf.mxu0
      %v1135 = vadd.f32 %v1008, %v1134
      %1136 = vmatmul.bf16.gmra.mxu0 %v972
      %v1137 = vpop.f32.mrf.mxu0
      %v1138 = vadd.f32 %v1008, %v1137
      %v1139 = vpop.f32.mrf.mxu0
      %v1140 = vadd.f32 %v1008, %v1139
      %1141 = vmatmul.bf16.gmra.mxu0 %v973
      %v1142 = vpop.f32.mrf.mxu0
      %v1143 = vadd.f32 %v1008, %v1142
      %v1144 = vpop.f32.mrf.mxu0
      %v1145 = vadd.f32 %v1008, %v1144
      %1146 = vmatmul.bf16.gmra.mxu0 %v974
      %v1147 = vpop.f32.mrf.mxu0
      %v1148 = vadd.f32 %v1008, %v1147
      %v1149 = vpop.f32.mrf.mxu0
      %v1150 = vadd.f32 %v1008, %v1149
      %1151 = vmatmul.bf16.gmra.mxu0 %v975
      %v1152 = vpop.f32.mrf.mxu0
      %v1153 = vadd.f32 %v1008, %v1152
      %v1154 = vpop.f32.mrf.mxu0
      %v1155 = vadd.f32 %v1008, %v1154
      %1156 = vmatmul.bf16.gmra.mxu0 %v976
      %v1157 = vpop.f32.mrf.mxu0
      %v1158 = vadd.f32 %v1008, %v1157
      %v1159 = vpop.f32.mrf.mxu0
      %v1160 = vadd.f32 %v1008, %v1159
      %1161 = vmatmul.bf16.gmra.mxu0 %v977
      %v1162 = vpop.f32.mrf.mxu0
      %v1163 = vadd.f32 %v1008, %v1162
      %v1164 = vpop.f32.mrf.mxu0
      %v1165 = vadd.f32 %v1008, %v1164
      %1166 = vmatmul.bf16.gmra.mxu0 %v978
      %v1167 = vpop.f32.mrf.mxu0
      %v1168 = vadd.f32 %v1008, %v1167
      %v1169 = vpop.f32.mrf.mxu0
      %v1170 = vadd.f32 %v1008, %v1169
      %1171 = vmatmul.bf16.gmra.mxu0 %v979
      %v1172 = vpop.f32.mrf.mxu0
      %v1173 = vadd.f32 %v1008, %v1172
      %v1174 = vpop.f32.mrf.mxu0
      %v1175 = vadd.f32 %v1008, %v1174
      %1176 = vmatmul.bf16.gmra.mxu0 %v980
      %v1177 = vpop.f32.mrf.mxu0
      %v1178 = vadd.f32 %v1008, %v1177
      %v1179 = vpop.f32.mrf.mxu0
      %v1180 = vadd.f32 %v1008, %v1179
      %1181 = vmatmul.bf16.gmra.mxu0 %v981
      %v1182 = vpop.f32.mrf.mxu0
      %v1183 = vadd.f32 %v1008, %v1182
      %v1184 = vpop.f32.mrf.mxu0
      %v1185 = vadd.f32 %v1008, %v1184
      %1186 = vmatmul.bf16.gmra.mxu0 %v982
      %v1187 = vpop.f32.mrf.mxu0
      %v1188 = vadd.f32 %v1008, %v1187
      %v1189 = vpop.f32.mrf.mxu0
      %v1190 = vadd.f32 %v1008, %v1189
      %1191 = vmatmul.bf16.gmra.mxu0 %v983
      %v1192 = vpop.f32.mrf.mxu0
      %v1193 = vadd.f32 %v1008, %v1192
      %v1194 = vpop.f32.mrf.mxu0
      %v1195 = vadd.f32 %v1008, %v1194
      %1196 = vmatmul.bf16.gmra.mxu0 %v984
      %v1197 = vpop.f32.mrf.mxu0
      %v1198 = vadd.f32 %v1008, %v1197
      %v1199 = vpop.f32.mrf.mxu0
      %v1200 = vadd.f32 %v1008, %v1199
      %1201 = vmatmul.bf16.gmra.mxu0 %v985
      %v1202 = vpop.f32.mrf.mxu0
      %v1203 = vadd.f32 %v1008, %v1202
      %v1204 = vpop.f32.mrf.mxu0
      %v1205 = vadd.f32 %v1008, %v1204
      %1206 = vmatmul.bf16.gmra.mxu0 %v986
      %v1207 = vpop.f32.mrf.mxu0
      %v1208 = vadd.f32 %v1008, %v1207
      %v1209 = vpop.f32.mrf.mxu0
      %v1210 = vadd.f32 %v1008, %v1209
      %1211 = vmatmul.bf16.gmra.mxu0 %v987
      %v1212 = vpop.f32.mrf.mxu0
      %v1213 = vadd.f32 %v1008, %v1212
      %v1214 = vpop.f32.mrf.mxu0
      %v1215 = vadd.f32 %v1008, %v1214
      %1216 = vmatmul.bf16.gmra.mxu0 %v988
      %v1217 = vpop.f32.mrf.mxu0
      %v1218 = vadd.f32 %v1008, %v1217
      %v1219 = vpop.f32.mrf.mxu0
      %v1220 = vadd.f32 %v1008, %v1219
      %1221 = vmatmul.bf16.gmra.mxu0 %v989
      %v1222 = vpop.f32.mrf.mxu0
      %v1223 = vadd.f32 %v1008, %v1222
      %v1224 = vpop.f32.mrf.mxu0
      %1225 = vdwg.mxu0
      %v1226 = vmul.f32 %v1068, 0.5
      %v1227 = vmul.f32 %v1070, 0.5
      %v1228 = vmul.f32 %v1073, 0.5
      %v1229 = vmul.f32 %v1075, 0.5
      %v1230 = vmul.f32 %v1078, 0.5
      %v1231 = vmul.f32 %v1080, 0.5
      %v1232 = vmul.f32 %v1083, 0.5
      %v1233 = vmul.f32 %v1085, 0.5
      %v1234 = vmul.f32 %v1088, 0.5
      %v1235 = vmul.f32 %v1090, 0.5
      %v1236 = vmul.f32 %v1093, 0.5
      %v1237 = vmul.f32 %v1095, 0.5
      %v1238 = vmul.f32 %v1098, 0.5
      %v1239 = vmul.f32 %v1100, 0.5
      %v1240 = vmul.f32 %v1103, 0.5
      %v1241 = vmul.f32 %v1105, 0.5
      %v1242 = vmul.f32 %v1108, 0.5
      %v1243 = vmul.f32 %v1110, 0.5
      %v1244 = vmul.f32 %v1113, 0.5
      %v1245 = vmul.f32 %v1115, 0.5
      %v1246 = vmul.f32 %v1118, 0.5
      %v1247 = vmul.f32 %v1120, 0.5
      %v1248 = vmul.f32 %v1123, 0.5
      %v1249 = vmul.f32 %v1125, 0.5
      %v1250 = vmul.f32 %v1128, 0.5
      %v1251 = vmul.f32 %v1130, 0.5
      %v1252 = vmul.f32 %v1133, 0.5
      %v1253 = vmul.f32 %v1135, 0.5
      %v1254 = vmul.f32 %v1138, 0.5
      %v1255 = vmul.f32 %v1140, 0.5
      %v1256 = vmul.f32 %v1143, 0.5
      %v1257 = vmul.f32 %v1145, 0.5
      %v1258 = vmul.f32 %v1148, 0.5
      %v1259 = vmul.f32 %v1150, 0.5
      %v1260 = vmul.f32 %v1153, 0.5
      %v1261 = vmul.f32 %v1155, 0.5
      %v1262 = vmul.f32 %v1158, 0.5
      %v1263 = vmul.f32 %v1160, 0.5
      %v1264 = vmul.f32 %v1163, 0.5
      %v1265 = vmul.f32 %v1165, 0.5
      %v1266 = vmul.f32 %v1168, 0.5
      %v1267 = vmul.f32 %v1170, 0.5
      %v1268 = vmul.f32 %v1173, 0.5
      %v1269 = vmul.f32 %v1175, 0.5
      %v1270 = vmul.f32 %v1178, 0.5
      %v1271 = vmul.f32 %v1180, 0.5
      %v1272 = vmul.f32 %v1183, 0.5
      %v1273 = vmul.f32 %v1185, 0.5
      %v1274 = vmul.f32 %v1188, 0.5
      %v1275 = vmul.f32 %v1190, 0.5
      %v1276 = vmul.f32 %v1193, 0.5
      %v1277 = vmul.f32 %v1195, 0.5
      %v1278 = vmul.f32 %v1198, 0.5
      %v1279 = vmul.f32 %v1200, 0.5
      %v1280 = vmul.f32 %v1203, 0.5
      %v1281 = vmul.f32 %v1205, 0.5
      %v1282 = vmul.f32 %v1208, 0.5
      %v1283 = vmul.f32 %v1210, 0.5
      %v1284 = vmul.f32 %v1213, 0.5
      %v1285 = vmul.f32 %v1215, 0.5
      %v1286 = vmul.f32 %v1218, 0.5
      %v1287 = vmul.f32 %v1220, 0.5
      %v1288 = vmul.f32 %v1223, 0.5
      %v1289 = vtanh.pop %v1226
      %v1290 = vtanh.pop %v1227
      %v1291 = vtanh.pop %v1228
      %v1292 = vtanh.pop %v1229
      %v1293 = vtanh.pop %v1230
      %v1294 = vtanh.pop %v1231
      %v1295 = vtanh.pop %v1232
      %v1296 = vtanh.pop %v1233
      %v1297 = vtanh.pop %v1234
      %v1298 = vtanh.pop %v1235
      %v1299 = vtanh.pop %v1236
      %v1300 = vtanh.pop %v1237
      %v1301 = vtanh.pop %v1238
      %v1302 = vtanh.pop %v1239
      %v1303 = vtanh.pop %v1240
      %v1304 = vtanh.pop %v1241
      %v1305 = vtanh.pop %v1242
      %v1306 = vtanh.pop %v1243
      %v1307 = vtanh.pop %v1244
      %v1308 = vtanh.pop %v1245
      %v1309 = vtanh.pop %v1246
      %v1310 = vtanh.pop %v1247
      %v1311 = vtanh.pop %v1248
      %v1312 = vtanh.pop %v1249
      %v1313 = vtanh.pop %v1250
      %v1314 = vtanh.pop %v1251
      %v1315 = vtanh.pop %v1252
      %v1316 = vtanh.pop %v1253
      %v1317 = vtanh.pop %v1254
      %v1318 = vtanh.pop %v1255
      %v1319 = vtanh.pop %v1256
      %v1320 = vtanh.pop %v1257
      %v1321 = vtanh.pop %v1258
      %v1322 = vtanh.pop %v1259
      %v1323 = vtanh.pop %v1260
      %v1324 = vtanh.pop %v1261
      %v1325 = vtanh.pop %v1262
      %v1326 = vtanh.pop %v1263
      %v1327 = vtanh.pop %v1264
      %v1328 = vtanh.pop %v1265
      %v1329 = vtanh.pop %v1266
      %v1330 = vtanh.pop %v1267
      %v1331 = vtanh.pop %v1268
      %v1332 = vtanh.pop %v1269
      %v1333 = vtanh.pop %v1270
      %v1334 = vtanh.pop %v1271
      %v1335 = vtanh.pop %v1272
      %v1336 = vtanh.pop %v1273
      %v1337 = vtanh.pop %v1274
      %v1338 = vtanh.pop %v1275
      %v1339 = vtanh.pop %v1276
      %v1340 = vtanh.pop %v1277
      %v1341 = vtanh.pop %v1278
      %v1342 = vtanh.pop %v1279
      %v1343 = vtanh.pop %v1280
      %v1344 = vtanh.pop %v1281
      %v1345 = vtanh.pop %v1282
      %v1346 = vtanh.pop %v1283
      %v1347 = vtanh.pop %v1284
      %v1348 = vtanh.pop %v1285
      %v1349 = vtanh.pop %v1286
      %v1350 = vtanh.pop %v1287
      %v1351 = vtanh.pop %v1288
      %v1352 = vadd.f32 %v1289, 1.0
      %v1353 = vadd.f32 %v1290, 1.0
      %v1354 = vadd.f32 %v1291, 1.0
      %v1355 = vadd.f32 %v1292, 1.0
      %v1356 = vadd.f32 %v1293, 1.0
      %v1357 = vadd.f32 %v1294, 1.0
      %v1358 = vadd.f32 %v1295, 1.0
      %v1359 = vadd.f32 %v1296, 1.0
      %v1360 = vadd.f32 %v1297, 1.0
      %v1361 = vadd.f32 %v1298, 1.0
      %v1362 = vadd.f32 %v1299, 1.0
      %v1363 = vadd.f32 %v1300, 1.0
      %v1364 = vadd.f32 %v1301, 1.0
      %v1365 = vadd.f32 %v1302, 1.0
      %v1366 = vadd.f32 %v1303, 1.0
      %v1367 = vadd.f32 %v1304, 1.0
      %v1368 = vadd.f32 %v1305, 1.0
      %v1369 = vadd.f32 %v1306, 1.0
      %v1370 = vadd.f32 %v1307, 1.0
      %v1371 = vadd.f32 %v1308, 1.0
      %v1372 = vadd.f32 %v1309, 1.0
      %v1373 = vadd.f32 %v1310, 1.0
      %v1374 = vadd.f32 %v1311, 1.0
      %v1375 = vadd.f32 %v1312, 1.0
      %v1376 = vadd.f32 %v1313, 1.0
      %v1377 = vadd.f32 %v1314, 1.0
      %v1378 = vadd.f32 %v1315, 1.0
      %v1379 = vadd.f32 %v1316, 1.0
      %v1380 = vadd.f32 %v1317, 1.0
      %v1381 = vadd.f32 %v1318, 1.0
      %v1382 = vadd.f32 %v1319, 1.0
      %v1383 = vadd.f32 %v1320, 1.0
      %v1384 = vadd.f32 %v1321, 1.0
      %v1385 = vadd.f32 %v1322, 1.0
      %v1386 = vadd.f32 %v1323, 1.0
      %v1387 = vadd.f32 %v1324, 1.0
      %v1388 = vadd.f32 %v1325, 1.0
      %v1389 = vadd.f32 %v1326, 1.0
      %v1390 = vadd.f32 %v1327, 1.0
      %v1391 = vadd.f32 %v1328, 1.0
      %v1392 = vadd.f32 %v1329, 1.0
      %v1393 = vadd.f32 %v1330, 1.0
      %v1394 = vadd.f32 %v1331, 1.0
      %v1395 = vadd.f32 %v1332, 1.0
      %v1396 = vadd.f32 %v1333, 1.0
      %v1397 = vadd.f32 %v1334, 1.0
      %v1398 = vadd.f32 %v1335, 1.0
      %v1399 = vadd.f32 %v1336, 1.0
      %v1400 = vadd.f32 %v1337, 1.0
      %v1401 = vadd.f32 %v1338, 1.0
      %v1402 = vadd.f32 %v1339, 1.0
      %v1403 = vadd.f32 %v1340, 1.0
      %v1404 = vadd.f32 %v1341, 1.0
      %v1405 = vadd.f32 %v1342, 1.0
      %v1406 = vadd.f32 %v1343, 1.0
      %v1407 = vadd.f32 %v1344, 1.0
      %v1408 = vadd.f32 %v1345, 1.0
      %v1409 = vadd.f32 %v1346, 1.0
      %v1410 = vadd.f32 %v1347, 1.0
      %v1411 = vadd.f32 %v1348, 1.0
      %v1412 = vadd.f32 %v1349, 1.0
      %v1413 = vadd.f32 %v1350, 1.0
      %v1414 = vadd.f32 %v1351, 1.0
      %v1415 = vmul.f32 %v1226, %v1352
      %v1416 = vmul.f32 %v1227, %v1353
      %v1417 = vmul.f32 %v1228, %v1354
      %v1418 = vmul.f32 %v1229, %v1355
      %v1419 = vmul.f32 %v1230, %v1356
      %v1420 = vmul.f32 %v1231, %v1357
      %v1421 = vmul.f32 %v1232, %v1358
      %v1422 = vmul.f32 %v1233, %v1359
      %v1423 = vmul.f32 %v1234, %v1360
      %v1424 = vmul.f32 %v1235, %v1361
      %v1425 = vmul.f32 %v1236, %v1362
      %v1426 = vmul.f32 %v1237, %v1363
      %v1427 = vmul.f32 %v1238, %v1364
      %v1428 = vmul.f32 %v1239, %v1365
      %v1429 = vmul.f32 %v1240, %v1366
      %v1430 = vmul.f32 %v1241, %v1367
      %v1431 = vmul.f32 %v1242, %v1368
      %v1432 = vmul.f32 %v1243, %v1369
      %v1433 = vmul.f32 %v1244, %v1370
      %v1434 = vmul.f32 %v1245, %v1371
      %v1435 = vmul.f32 %v1246, %v1372
      %v1436 = vmul.f32 %v1247, %v1373
      %v1437 = vmul.f32 %v1248, %v1374
      %v1438 = vmul.f32 %v1249, %v1375
      %v1439 = vmul.f32 %v1250, %v1376
      %v1440 = vmul.f32 %v1251, %v1377
      %v1441 = vmul.f32 %v1252, %v1378
      %v1442 = vmul.f32 %v1253, %v1379
      %v1443 = vmul.f32 %v1254, %v1380
      %v1444 = vmul.f32 %v1255, %v1381
      %v1445 = vmul.f32 %v1256, %v1382
      %v1446 = vmul.f32 %v1257, %v1383
      %v1447 = vmul.f32 %v1258, %v1384
      %v1448 = vmul.f32 %v1259, %v1385
      %v1449 = vmul.f32 %v1260, %v1386
      %v1450 = vmul.f32 %v1261, %v1387
      %v1451 = vmul.f32 %v1262, %v1388
      %v1452 = vmul.f32 %v1263, %v1389
      %v1453 = vmul.f32 %v1264, %v1390
      %v1454 = vmul.f32 %v1265, %v1391
      %v1455 = vmul.f32 %v1266, %v1392
      %v1456 = vmul.f32 %v1267, %v1393
      %v1457 = vmul.f32 %v1268, %v1394
      %v1458 = vmul.f32 %v1269, %v1395
      %v1459 = vmul.f32 %v1270, %v1396
      %v1460 = vmul.f32 %v1271, %v1397
      %v1461 = vmul.f32 %v1272, %v1398
      %v1462 = vmul.f32 %v1273, %v1399
      %v1463 = vmul.f32 %v1274, %v1400
      %v1464 = vmul.f32 %v1275, %v1401
      %v1465 = vmul.f32 %v1276, %v1402
      %v1466 = vmul.f32 %v1277, %v1403
      %v1467 = vmul.f32 %v1278, %v1404
      %v1468 = vmul.f32 %v1279, %v1405
      %v1469 = vmul.f32 %v1280, %v1406
      %v1470 = vmul.f32 %v1281, %v1407
      %v1471 = vmul.f32 %v1282, %v1408
      %v1472 = vmul.f32 %v1283, %v1409
      %v1473 = vmul.f32 %v1284, %v1410
      %v1474 = vmul.f32 %v1285, %v1411
      %v1475 = vmul.f32 %v1286, %v1412
      %v1476 = vmul.f32 %v1287, %v1413
      %v1477 = vmul.f32 %v1288, %v1414
      %v1478 = vpack.c.bf16 %v1416, %v1415
      %v1479 = vpack.c.bf16 %v1418, %v1417
      %v1480 = vpack.c.bf16 %v1420, %v1419
      %v1481 = vpack.c.bf16 %v1422, %v1421
      %v1482 = vpack.c.bf16 %v1424, %v1423
      %v1483 = vpack.c.bf16 %v1426, %v1425
      %v1484 = vpack.c.bf16 %v1428, %v1427
      %v1485 = vpack.c.bf16 %v1430, %v1429
      %v1486 = vpack.c.bf16 %v1432, %v1431
      %v1487 = vpack.c.bf16 %v1434, %v1433
      %v1488 = vpack.c.bf16 %v1436, %v1435
      %v1489 = vpack.c.bf16 %v1438, %v1437
      %v1490 = vpack.c.bf16 %v1440, %v1439
      %v1491 = vpack.c.bf16 %v1442, %v1441
      %v1492 = vpack.c.bf16 %v1444, %v1443
      %v1493 = vpack.c.bf16 %v1446, %v1445
      %v1494 = vpack.c.bf16 %v1448, %v1447
      %v1495 = vpack.c.bf16 %v1450, %v1449
      %v1496 = vpack.c.bf16 %v1452, %v1451
      %v1497 = vpack.c.bf16 %v1454, %v1453
      %v1498 = vpack.c.bf16 %v1456, %v1455
      %v1499 = vpack.c.bf16 %v1458, %v1457
      %v1500 = vpack.c.bf16 %v1460, %v1459
      %v1501 = vpack.c.bf16 %v1462, %v1461
      %v1502 = vpack.c.bf16 %v1464, %v1463
      %v1503 = vpack.c.bf16 %v1466, %v1465
      %v1504 = vpack.c.bf16 %v1468, %v1467
      %v1505 = vpack.c.bf16 %v1470, %v1469
      %v1506 = vpack.c.bf16 %v1472, %v1471
      %v1507 = vpack.c.bf16 %v1474, %v1473
      %v1508 = vpack.c.bf16 %v1476, %v1475
      %v1509 = vpack.c.bf16 %v1477, %v1477
      %v1510 = vld [vmem:[%s5] sm:$0xf]
      %v1511 = vld [vmem:[%s5 + $0x4] sm:$0xf]
      %v1512 = vld [vmem:[%s5 + $0x8] sm:$0xf]
      %v1513 = vld [vmem:[%s5 + $0xc] sm:$0xf]
      %v1514 = vld [vmem:[%s5 + $0x10] sm:$0xf]
      %v1515 = vld [vmem:[%s5 + $0x14] sm:$0xf]
      %v1516 = vld [vmem:[%s5 + $0x18] sm:$0xf]
      %v1517 = vld [vmem:[%s5 + $0x1c] sm:$0xf]
      %v1518 = vld [vmem:[%s5 + $0x20] sm:$0xf]
      %v1519 = vld [vmem:[%s5 + $0x24] sm:$0xf]
      %v1520 = vld [vmem:[%s5 + $0x28] sm:$0xf]
      %v1521 = vld [vmem:[%s5 + $0x2c] sm:$0xf]
      %v1522 = vld [vmem:[%s5 + $0x30] sm:$0xf]
      %v1523 = vld [vmem:[%s5 + $0x34] sm:$0xf]
      %v1524 = vld [vmem:[%s5 + $0x38] sm:$0xf]
      %v1525 = vld [vmem:[%s5 + $0x3c] sm:$0xf]
      %v1526 = vld [vmem:[%s6] sm:$0x1]
      %v1528 = vperm.slane %v1526, 0
      %v1546 = vunpack.c.l.b16 %v1510
      %v1547 = vunpack.c.l.b16 %v1511
      %v1548 = vunpack.c.l.b16 %v1512
      %v1549 = vunpack.c.l.b16 %v1513
      %v1550 = vunpack.c.l.b16 %v1514
      %v1551 = vunpack.c.l.b16 %v1515
      %v1552 = vunpack.c.l.b16 %v1516
      %v1553 = vunpack.c.l.b16 %v1517
      %v1554 = vunpack.c.l.b16 %v1518
      %v1555 = vunpack.c.l.b16 %v1519
      %v1556 = vunpack.c.l.b16 %v1520
      %v1557 = vunpack.c.l.b16 %v1521
      %v1558 = vunpack.c.l.b16 %v1522
      %v1559 = vunpack.c.l.b16 %v1523
      %v1560 = vunpack.c.l.b16 %v1524
      %v1561 = vunpack.c.l.b16 %v1525
      %v1562 = vpack.c.b16 %v1547, %v1546
      %v1563 = vpack.c.b16 %v1549, %v1548
      %v1564 = vpack.c.b16 %v1551, %v1550
      %v1565 = vpack.c.b16 %v1553, %v1552
      %v1566 = vpack.c.b16 %v1555, %v1554
      %v1567 = vpack.c.b16 %v1557, %v1556
      %v1568 = vpack.c.b16 %v1559, %v1558
      %v1569 = vpack.c.b16 %v1561, %v1560
      %1578 = vmatpush.bf16.msra.mxu0 %v1569
      %1579 = vmatpush.bf16.msra.mxu0 %v1568
      %1580 = vmatpush.bf16.msra.mxu0 %v1567
      %1581 = vmatpush.bf16.msra.mxu0 %v1566
      %1582 = vmatpush.bf16.msra.mxu0 %v1565
      %1583 = vmatpush.bf16.msra.mxu0 %v1564
      %1584 = vmatpush.bf16.msra.mxu0 %v1563
      %1585 = vmatpush.bf16.msra.mxu0 %v1562
      %1586 = vmatmul.bf16.gmra.mxu0 %v1478
      %v1587 = vpop.f32.mrf.mxu0
      %v1588 = vadd.f32 %v1528, %v1587
      %v1589 = vpop.f32.mrf.mxu0
      %v1590 = vadd.f32 %v1528, %v1589
      %1591 = vmatmul.bf16.gmra.mxu0 %v1479
      %v1592 = vpop.f32.mrf.mxu0
      %v1593 = vadd.f32 %v1528, %v1592
      %v1594 = vpop.f32.mrf.mxu0
      %v1595 = vadd.f32 %v1528, %v1594
      %1596 = vmatmul.bf16.gmra.mxu0 %v1480
      %v1597 = vpop.f32.mrf.mxu0
      %v1598 = vadd.f32 %v1528, %v1597
      %v1599 = vpop.f32.mrf.mxu0
      %v1600 = vadd.f32 %v1528, %v1599
      %1601 = vmatmul.bf16.gmra.mxu0 %v1481
      %v1602 = vpop.f32.mrf.mxu0
      %v1603 = vadd.f32 %v1528, %v1602
      %v1604 = vpop.f32.mrf.mxu0
      %v1605 = vadd.f32 %v1528, %v1604
      %1606 = vmatmul.bf16.gmra.mxu0 %v1482
      %v1607 = vpop.f32.mrf.mxu0
      %v1608 = vadd.f32 %v1528, %v1607
      %v1609 = vpop.f32.mrf.mxu0
      %v1610 = vadd.f32 %v1528, %v1609
      %1611 = vmatmul.bf16.gmra.mxu0 %v1483
      %v1612 = vpop.f32.mrf.mxu0
      %v1613 = vadd.f32 %v1528, %v1612
      %v1614 = vpop.f32.mrf.mxu0
      %v1615 = vadd.f32 %v1528, %v1614
      %1616 = vmatmul.bf16.gmra.mxu0 %v1484
      %v1617 = vpop.f32.mrf.mxu0
      %v1618 = vadd.f32 %v1528, %v1617
      %v1619 = vpop.f32.mrf.mxu0
      %v1620 = vadd.f32 %v1528, %v1619
      %1621 = vmatmul.bf16.gmra.mxu0 %v1485
      %v1622 = vpop.f32.mrf.mxu0
      %v1623 = vadd.f32 %v1528, %v1622
      %v1624 = vpop.f32.mrf.mxu0
      %v1625 = vadd.f32 %v1528, %v1624
      %1626 = vmatmul.bf16.gmra.mxu0 %v1486
      %v1627 = vpop.f32.mrf.mxu0
      %v1628 = vadd.f32 %v1528, %v1627
      %v1629 = vpop.f32.mrf.mxu0
      %v1630 = vadd.f32 %v1528, %v1629
      %1631 = vmatmul.bf16.gmra.mxu0 %v1487
      %v1632 = vpop.f32.mrf.mxu0
      %v1633 = vadd.f32 %v1528, %v1632
      %v1634 = vpop.f32.mrf.mxu0
      %v1635 = vadd.f32 %v1528, %v1634
      %1636 = vmatmul.bf16.gmra.mxu0 %v1488
      %v1637 = vpop.f32.mrf.mxu0
      %v1638 = vadd.f32 %v1528, %v1637
      %v1639 = vpop.f32.mrf.mxu0
      %v1640 = vadd.f32 %v1528, %v1639
      %1641 = vmatmul.bf16.gmra.mxu0 %v1489
      %v1642 = vpop.f32.mrf.mxu0
      %v1643 = vadd.f32 %v1528, %v1642
      %v1644 = vpop.f32.mrf.mxu0
      %v1645 = vadd.f32 %v1528, %v1644
      %1646 = vmatmul.bf16.gmra.mxu0 %v1490
      %v1647 = vpop.f32.mrf.mxu0
      %v1648 = vadd.f32 %v1528, %v1647
      %v1649 = vpop.f32.mrf.mxu0
      %v1650 = vadd.f32 %v1528, %v1649
      %1651 = vmatmul.bf16.gmra.mxu0 %v1491
      %v1652 = vpop.f32.mrf.mxu0
      %v1653 = vadd.f32 %v1528, %v1652
      %v1654 = vpop.f32.mrf.mxu0
      %v1655 = vadd.f32 %v1528, %v1654
      %1656 = vmatmul.bf16.gmra.mxu0 %v1492
      %v1657 = vpop.f32.mrf.mxu0
      %v1658 = vadd.f32 %v1528, %v1657
      %v1659 = vpop.f32.mrf.mxu0
      %v1660 = vadd.f32 %v1528, %v1659
      %1661 = vmatmul.bf16.gmra.mxu0 %v1493
      %v1662 = vpop.f32.mrf.mxu0
      %v1663 = vadd.f32 %v1528, %v1662
      %v1664 = vpop.f32.mrf.mxu0
      %v1665 = vadd.f32 %v1528, %v1664
      %1666 = vmatmul.bf16.gmra.mxu0 %v1494
      %v1667 = vpop.f32.mrf.mxu0
      %v1668 = vadd.f32 %v1528, %v1667
      %v1669 = vpop.f32.mrf.mxu0
      %v1670 = vadd.f32 %v1528, %v1669
      %1671 = vmatmul.bf16.gmra.mxu0 %v1495
      %v1672 = vpop.f32.mrf.mxu0
      %v1673 = vadd.f32 %v1528, %v1672
      %v1674 = vpop.f32.mrf.mxu0
      %v1675 = vadd.f32 %v1528, %v1674
      %1676 = vmatmul.bf16.gmra.mxu0 %v1496
      %v1677 = vpop.f32.mrf.mxu0
      %v1678 = vadd.f32 %v1528, %v1677
      %v1679 = vpop.f32.mrf.mxu0
      %v1680 = vadd.f32 %v1528, %v1679
      %1681 = vmatmul.bf16.gmra.mxu0 %v1497
      %v1682 = vpop.f32.mrf.mxu0
      %v1683 = vadd.f32 %v1528, %v1682
      %v1684 = vpop.f32.mrf.mxu0
      %v1685 = vadd.f32 %v1528, %v1684
      %1686 = vmatmul.bf16.gmra.mxu0 %v1498
      %v1687 = vpop.f32.mrf.mxu0
      %v1688 = vadd.f32 %v1528, %v1687
      %v1689 = vpop.f32.mrf.mxu0
      %v1690 = vadd.f32 %v1528, %v1689
      %1691 = vmatmul.bf16.gmra.mxu0 %v1499
      %v1692 = vpop.f32.mrf.mxu0
      %v1693 = vadd.f32 %v1528, %v1692
      %v1694 = vpop.f32.mrf.mxu0
      %v1695 = vadd.f32 %v1528, %v1694
      %1696 = vmatmul.bf16.gmra.mxu0 %v1500
      %v1697 = vpop.f32.mrf.mxu0
      %v1698 = vadd.f32 %v1528, %v1697
      %v1699 = vpop.f32.mrf.mxu0
      %v1700 = vadd.f32 %v1528, %v1699
      %1701 = vmatmul.bf16.gmra.mxu0 %v1501
      %v1702 = vpop.f32.mrf.mxu0
      %v1703 = vadd.f32 %v1528, %v1702
      %v1704 = vpop.f32.mrf.mxu0
      %v1705 = vadd.f32 %v1528, %v1704
      %1706 = vmatmul.bf16.gmra.mxu0 %v1502
      %v1707 = vpop.f32.mrf.mxu0
      %v1708 = vadd.f32 %v1528, %v1707
      %v1709 = vpop.f32.mrf.mxu0
      %v1710 = vadd.f32 %v1528, %v1709
      %1711 = vmatmul.bf16.gmra.mxu0 %v1503
      %v1712 = vpop.f32.mrf.mxu0
      %v1713 = vadd.f32 %v1528, %v1712
      %v1714 = vpop.f32.mrf.mxu0
      %v1715 = vadd.f32 %v1528, %v1714
      %1716 = vmatmul.bf16.gmra.mxu0 %v1504
      %v1717 = vpop.f32.mrf.mxu0
      %v1718 = vadd.f32 %v1528, %v1717
      %v1719 = vpop.f32.mrf.mxu0
      %v1720 = vadd.f32 %v1528, %v1719
      %1721 = vmatmul.bf16.gmra.mxu0 %v1505
      %v1722 = vpop.f32.mrf.mxu0
      %v1723 = vadd.f32 %v1528, %v1722
      %v1724 = vpop.f32.mrf.mxu0
      %v1725 = vadd.f32 %v1528, %v1724
      %1726 = vmatmul.bf16.gmra.mxu0 %v1506
      %v1727 = vpop.f32.mrf.mxu0
      %v1728 = vadd.f32 %v1528, %v1727
      %v1729 = vpop.f32.mrf.mxu0
      %v1730 = vadd.f32 %v1528, %v1729
      %1731 = vmatmul.bf16.gmra.mxu0 %v1507
      %v1732 = vpop.f32.mrf.mxu0
      %v1733 = vadd.f32 %v1528, %v1732
      %v1734 = vpop.f32.mrf.mxu0
      %v1735 = vadd.f32 %v1528, %v1734
      %1736 = vmatmul.bf16.gmra.mxu0 %v1508
      %v1737 = vpop.f32.mrf.mxu0
      %v1738 = vadd.f32 %v1528, %v1737
      %v1739 = vpop.f32.mrf.mxu0
      %v1740 = vadd.f32 %v1528, %v1739
      %1741 = vmatmul.bf16.gmra.mxu0 %v1509
      %v1742 = vpop.f32.mrf.mxu0
      %v1743 = vadd.f32 %v1528, %v1742
      %v1744 = vpop.f32.mrf.mxu0
      %1745 = vdwg.mxu0
      %v1746 = vmul.f32 %v1588, 0.5
      %v1747 = vmul.f32 %v1590, 0.5
      %v1748 = vmul.f32 %v1593, 0.5
      %v1749 = vmul.f32 %v1595, 0.5
      %v1750 = vmul.f32 %v1598, 0.5
      %v1751 = vmul.f32 %v1600, 0.5
      %v1752 = vmul.f32 %v1603, 0.5
      %v1753 = vmul.f32 %v1605, 0.5
      %v1754 = vmul.f32 %v1608, 0.5
      %v1755 = vmul.f32 %v1610, 0.5
      %v1756 = vmul.f32 %v1613, 0.5
      %v1757 = vmul.f32 %v1615, 0.5
      %v1758 = vmul.f32 %v1618, 0.5
      %v1759 = vmul.f32 %v1620, 0.5
      %v1760 = vmul.f32 %v1623, 0.5
      %v1761 = vmul.f32 %v1625, 0.5
      %v1762 = vmul.f32 %v1628, 0.5
      %v1763 = vmul.f32 %v1630, 0.5
      %v1764 = vmul.f32 %v1633, 0.5
      %v1765 = vmul.f32 %v1635, 0.5
      %v1766 = vmul.f32 %v1638, 0.5
      %v1767 = vmul.f32 %v1640, 0.5
      %v1768 = vmul.f32 %v1643, 0.5
      %v1769 = vmul.f32 %v1645, 0.5
      %v1770 = vmul.f32 %v1648, 0.5
      %v1771 = vmul.f32 %v1650, 0.5
      %v1772 = vmul.f32 %v1653, 0.5
      %v1773 = vmul.f32 %v1655, 0.5
      %v1774 = vmul.f32 %v1658, 0.5
      %v1775 = vmul.f32 %v1660, 0.5
      %v1776 = vmul.f32 %v1663, 0.5
      %v1777 = vmul.f32 %v1665, 0.5
      %v1778 = vmul.f32 %v1668, 0.5
      %v1779 = vmul.f32 %v1670, 0.5
      %v1780 = vmul.f32 %v1673, 0.5
      %v1781 = vmul.f32 %v1675, 0.5
      %v1782 = vmul.f32 %v1678, 0.5
      %v1783 = vmul.f32 %v1680, 0.5
      %v1784 = vmul.f32 %v1683, 0.5
      %v1785 = vmul.f32 %v1685, 0.5
      %v1786 = vmul.f32 %v1688, 0.5
      %v1787 = vmul.f32 %v1690, 0.5
      %v1788 = vmul.f32 %v1693, 0.5
      %v1789 = vmul.f32 %v1695, 0.5
      %v1790 = vmul.f32 %v1698, 0.5
      %v1791 = vmul.f32 %v1700, 0.5
      %v1792 = vmul.f32 %v1703, 0.5
      %v1793 = vmul.f32 %v1705, 0.5
      %v1794 = vmul.f32 %v1708, 0.5
      %v1795 = vmul.f32 %v1710, 0.5
      %v1796 = vmul.f32 %v1713, 0.5
      %v1797 = vmul.f32 %v1715, 0.5
      %v1798 = vmul.f32 %v1718, 0.5
      %v1799 = vmul.f32 %v1720, 0.5
      %v1800 = vmul.f32 %v1723, 0.5
      %v1801 = vmul.f32 %v1725, 0.5
      %v1802 = vmul.f32 %v1728, 0.5
      %v1803 = vmul.f32 %v1730, 0.5
      %v1804 = vmul.f32 %v1733, 0.5
      %v1805 = vmul.f32 %v1735, 0.5
      %v1806 = vmul.f32 %v1738, 0.5
      %v1807 = vmul.f32 %v1740, 0.5
      %v1808 = vmul.f32 %v1743, 0.5
      %v1809 = vtanh.pop %v1746
      %v1810 = vtanh.pop %v1747
      %v1811 = vtanh.pop %v1748
      %v1812 = vtanh.pop %v1749
      %v1813 = vtanh.pop %v1750
      %v1814 = vtanh.pop %v1751
      %v1815 = vtanh.pop %v1752
      %v1816 = vtanh.pop %v1753
      %v1817 = vtanh.pop %v1754
      %v1818 = vtanh.pop %v1755
      %v1819 = vtanh.pop %v1756
      %v1820 = vtanh.pop %v1757
      %v1821 = vtanh.pop %v1758
      %v1822 = vtanh.pop %v1759
      %v1823 = vtanh.pop %v1760
      %v1824 = vtanh.pop %v1761
      %v1825 = vtanh.pop %v1762
      %v1826 = vtanh.pop %v1763
      %v1827 = vtanh.pop %v1764
      %v1828 = vtanh.pop %v1765
      %v1829 = vtanh.pop %v1766
      %v1830 = vtanh.pop %v1767
      %v1831 = vtanh.pop %v1768
      %v1832 = vtanh.pop %v1769
      %v1833 = vtanh.pop %v1770
      %v1834 = vtanh.pop %v1771
      %v1835 = vtanh.pop %v1772
      %v1836 = vtanh.pop %v1773
      %v1837 = vtanh.pop %v1774
      %v1838 = vtanh.pop %v1775
      %v1839 = vtanh.pop %v1776
      %v1840 = vtanh.pop %v1777
      %v1841 = vtanh.pop %v1778
      %v1842 = vtanh.pop %v1779
      %v1843 = vtanh.pop %v1780
      %v1844 = vtanh.pop %v1781
      %v1845 = vtanh.pop %v1782
      %v1846 = vtanh.pop %v1783
      %v1847 = vtanh.pop %v1784
      %v1848 = vtanh.pop %v1785
      %v1849 = vtanh.pop %v1786
      %v1850 = vtanh.pop %v1787
      %v1851 = vtanh.pop %v1788
      %v1852 = vtanh.pop %v1789
      %v1853 = vtanh.pop %v1790
      %v1854 = vtanh.pop %v1791
      %v1855 = vtanh.pop %v1792
      %v1856 = vtanh.pop %v1793
      %v1857 = vtanh.pop %v1794
      %v1858 = vtanh.pop %v1795
      %v1859 = vtanh.pop %v1796
      %v1860 = vtanh.pop %v1797
      %v1861 = vtanh.pop %v1798
      %v1862 = vtanh.pop %v1799
      %v1863 = vtanh.pop %v1800
      %v1864 = vtanh.pop %v1801
      %v1865 = vtanh.pop %v1802
      %v1866 = vtanh.pop %v1803
      %v1867 = vtanh.pop %v1804
      %v1868 = vtanh.pop %v1805
      %v1869 = vtanh.pop %v1806
      %v1870 = vtanh.pop %v1807
      %v1871 = vtanh.pop %v1808
      %v1872 = vadd.f32 %v1809, 1.0
      %v1873 = vadd.f32 %v1810, 1.0
      %v1874 = vadd.f32 %v1811, 1.0
      %v1875 = vadd.f32 %v1812, 1.0
      %v1876 = vadd.f32 %v1813, 1.0
      %v1877 = vadd.f32 %v1814, 1.0
      %v1878 = vadd.f32 %v1815, 1.0
      %v1879 = vadd.f32 %v1816, 1.0
      %v1880 = vadd.f32 %v1817, 1.0
      %v1881 = vadd.f32 %v1818, 1.0
      %v1882 = vadd.f32 %v1819, 1.0
      %v1883 = vadd.f32 %v1820, 1.0
      %v1884 = vadd.f32 %v1821, 1.0
      %v1885 = vadd.f32 %v1822, 1.0
      %v1886 = vadd.f32 %v1823, 1.0
      %v1887 = vadd.f32 %v1824, 1.0
      %v1888 = vadd.f32 %v1825, 1.0
      %v1889 = vadd.f32 %v1826, 1.0
      %v1890 = vadd.f32 %v1827, 1.0
      %v1891 = vadd.f32 %v1828, 1.0
      %v1892 = vadd.f32 %v1829, 1.0
      %v1893 = vadd.f32 %v1830, 1.0
      %v1894 = vadd.f32 %v1831, 1.0
      %v1895 = vadd.f32 %v1832, 1.0
      %v1896 = vadd.f32 %v1833, 1.0
      %v1897 = vadd.f32 %v1834, 1.0
      %v1898 = vadd.f32 %v1835, 1.0
      %v1899 = vadd.f32 %v1836, 1.0
      %v1900 = vadd.f32 %v1837, 1.0
      %v1901 = vadd.f32 %v1838, 1.0
      %v1902 = vadd.f32 %v1839, 1.0
      %v1903 = vadd.f32 %v1840, 1.0
      %v1904 = vadd.f32 %v1841, 1.0
      %v1905 = vadd.f32 %v1842, 1.0
      %v1906 = vadd.f32 %v1843, 1.0
      %v1907 = vadd.f32 %v1844, 1.0
      %v1908 = vadd.f32 %v1845, 1.0
      %v1909 = vadd.f32 %v1846, 1.0
      %v1910 = vadd.f32 %v1847, 1.0
      %v1911 = vadd.f32 %v1848, 1.0
      %v1912 = vadd.f32 %v1849, 1.0
      %v1913 = vadd.f32 %v1850, 1.0
      %v1914 = vadd.f32 %v1851, 1.0
      %v1915 = vadd.f32 %v1852, 1.0
      %v1916 = vadd.f32 %v1853, 1.0
      %v1917 = vadd.f32 %v1854, 1.0
      %v1918 = vadd.f32 %v1855, 1.0
      %v1919 = vadd.f32 %v1856, 1.0
      %v1920 = vadd.f32 %v1857, 1.0
      %v1921 = vadd.f32 %v1858, 1.0
      %v1922 = vadd.f32 %v1859, 1.0
      %v1923 = vadd.f32 %v1860, 1.0
      %v1924 = vadd.f32 %v1861, 1.0
      %v1925 = vadd.f32 %v1862, 1.0
      %v1926 = vadd.f32 %v1863, 1.0
      %v1927 = vadd.f32 %v1864, 1.0
      %v1928 = vadd.f32 %v1865, 1.0
      %v1929 = vadd.f32 %v1866, 1.0
      %v1930 = vadd.f32 %v1867, 1.0
      %v1931 = vadd.f32 %v1868, 1.0
      %v1932 = vadd.f32 %v1869, 1.0
      %v1933 = vadd.f32 %v1870, 1.0
      %v1934 = vadd.f32 %v1871, 1.0
      %v1935 = vmul.f32 %v1746, %v1872
      %v1936 = vmul.f32 %v1747, %v1873
      %v1937 = vmul.f32 %v1748, %v1874
      %v1938 = vmul.f32 %v1749, %v1875
      %v1939 = vmul.f32 %v1750, %v1876
      %v1940 = vmul.f32 %v1751, %v1877
      %v1941 = vmul.f32 %v1752, %v1878
      %v1942 = vmul.f32 %v1753, %v1879
      %v1943 = vmul.f32 %v1754, %v1880
      %v1944 = vmul.f32 %v1755, %v1881
      %v1945 = vmul.f32 %v1756, %v1882
      %v1946 = vmul.f32 %v1757, %v1883
      %v1947 = vmul.f32 %v1758, %v1884
      %v1948 = vmul.f32 %v1759, %v1885
      %v1949 = vmul.f32 %v1760, %v1886
      %v1950 = vmul.f32 %v1761, %v1887
      %v1951 = vmul.f32 %v1762, %v1888
      %v1952 = vmul.f32 %v1763, %v1889
      %v1953 = vmul.f32 %v1764, %v1890
      %v1954 = vmul.f32 %v1765, %v1891
      %v1955 = vmul.f32 %v1766, %v1892
      %v1956 = vmul.f32 %v1767, %v1893
      %v1957 = vmul.f32 %v1768, %v1894
      %v1958 = vmul.f32 %v1769, %v1895
      %v1959 = vmul.f32 %v1770, %v1896
      %v1960 = vmul.f32 %v1771, %v1897
      %v1961 = vmul.f32 %v1772, %v1898
      %v1962 = vmul.f32 %v1773, %v1899
      %v1963 = vmul.f32 %v1774, %v1900
      %v1964 = vmul.f32 %v1775, %v1901
      %v1965 = vmul.f32 %v1776, %v1902
      %v1966 = vmul.f32 %v1777, %v1903
      %v1967 = vmul.f32 %v1778, %v1904
      %v1968 = vmul.f32 %v1779, %v1905
      %v1969 = vmul.f32 %v1780, %v1906
      %v1970 = vmul.f32 %v1781, %v1907
      %v1971 = vmul.f32 %v1782, %v1908
      %v1972 = vmul.f32 %v1783, %v1909
      %v1973 = vmul.f32 %v1784, %v1910
      %v1974 = vmul.f32 %v1785, %v1911
      %v1975 = vmul.f32 %v1786, %v1912
      %v1976 = vmul.f32 %v1787, %v1913
      %v1977 = vmul.f32 %v1788, %v1914
      %v1978 = vmul.f32 %v1789, %v1915
      %v1979 = vmul.f32 %v1790, %v1916
      %v1980 = vmul.f32 %v1791, %v1917
      %v1981 = vmul.f32 %v1792, %v1918
      %v1982 = vmul.f32 %v1793, %v1919
      %v1983 = vmul.f32 %v1794, %v1920
      %v1984 = vmul.f32 %v1795, %v1921
      %v1985 = vmul.f32 %v1796, %v1922
      %v1986 = vmul.f32 %v1797, %v1923
      %v1987 = vmul.f32 %v1798, %v1924
      %v1988 = vmul.f32 %v1799, %v1925
      %v1989 = vmul.f32 %v1800, %v1926
      %v1990 = vmul.f32 %v1801, %v1927
      %v1991 = vmul.f32 %v1802, %v1928
      %v1992 = vmul.f32 %v1803, %v1929
      %v1993 = vmul.f32 %v1804, %v1930
      %v1994 = vmul.f32 %v1805, %v1931
      %v1995 = vmul.f32 %v1806, %v1932
      %v1996 = vmul.f32 %v1807, %v1933
      %v1997 = vmul.f32 %v1808, %v1934
      %v1998 = vpack.c.bf16 %v1936, %v1935
      %v1999 = vpack.c.bf16 %v1938, %v1937
      %v2000 = vpack.c.bf16 %v1940, %v1939
      %v2001 = vpack.c.bf16 %v1942, %v1941
      %v2002 = vpack.c.bf16 %v1944, %v1943
      %v2003 = vpack.c.bf16 %v1946, %v1945
      %v2004 = vpack.c.bf16 %v1948, %v1947
      %v2005 = vpack.c.bf16 %v1950, %v1949
      %v2006 = vpack.c.bf16 %v1952, %v1951
      %v2007 = vpack.c.bf16 %v1954, %v1953
      %v2008 = vpack.c.bf16 %v1956, %v1955
      %v2009 = vpack.c.bf16 %v1958, %v1957
      %v2010 = vpack.c.bf16 %v1960, %v1959
      %v2011 = vpack.c.bf16 %v1962, %v1961
      %v2012 = vpack.c.bf16 %v1964, %v1963
      %v2013 = vpack.c.bf16 %v1966, %v1965
      %v2014 = vpack.c.bf16 %v1968, %v1967
      %v2015 = vpack.c.bf16 %v1970, %v1969
      %v2016 = vpack.c.bf16 %v1972, %v1971
      %v2017 = vpack.c.bf16 %v1974, %v1973
      %v2018 = vpack.c.bf16 %v1976, %v1975
      %v2019 = vpack.c.bf16 %v1978, %v1977
      %v2020 = vpack.c.bf16 %v1980, %v1979
      %v2021 = vpack.c.bf16 %v1982, %v1981
      %v2022 = vpack.c.bf16 %v1984, %v1983
      %v2023 = vpack.c.bf16 %v1986, %v1985
      %v2024 = vpack.c.bf16 %v1988, %v1987
      %v2025 = vpack.c.bf16 %v1990, %v1989
      %v2026 = vpack.c.bf16 %v1992, %v1991
      %v2027 = vpack.c.bf16 %v1994, %v1993
      %v2028 = vpack.c.bf16 %v1996, %v1995
      %v2029 = vpack.c.bf16 %v1997, %v1997
      %v2030 = vld [vmem:[%s7] sm:$0xf]
      %v2031 = vld [vmem:[%s7 + $0x4] sm:$0xf]
      %v2032 = vld [vmem:[%s7 + $0x8] sm:$0xf]
      %v2033 = vld [vmem:[%s7 + $0xc] sm:$0xf]
      %v2034 = vld [vmem:[%s7 + $0x10] sm:$0xf]
      %v2035 = vld [vmem:[%s7 + $0x14] sm:$0xf]
      %v2036 = vld [vmem:[%s7 + $0x18] sm:$0xf]
      %v2037 = vld [vmem:[%s7 + $0x1c] sm:$0xf]
      %v2038 = vld [vmem:[%s7 + $0x20] sm:$0xf]
      %v2039 = vld [vmem:[%s7 + $0x24] sm:$0xf]
      %v2040 = vld [vmem:[%s7 + $0x28] sm:$0xf]
      %v2041 = vld [vmem:[%s7 + $0x2c] sm:$0xf]
      %v2042 = vld [vmem:[%s7 + $0x30] sm:$0xf]
      %v2043 = vld [vmem:[%s7 + $0x34] sm:$0xf]
      %v2044 = vld [vmem:[%s7 + $0x38] sm:$0xf]
      %v2045 = vld [vmem:[%s7 + $0x3c] sm:$0xf]
      %v2046 = vld [vmem:[%s8] sm:$0x1]
      %v2048 = vperm.slane %v2046, 0
      %v2066 = vunpack.c.l.b16 %v2030
      %v2067 = vunpack.c.l.b16 %v2031
      %v2068 = vunpack.c.l.b16 %v2032
      %v2069 = vunpack.c.l.b16 %v2033
      %v2070 = vunpack.c.l.b16 %v2034
      %v2071 = vunpack.c.l.b16 %v2035
      %v2072 = vunpack.c.l.b16 %v2036
      %v2073 = vunpack.c.l.b16 %v2037
      %v2074 = vunpack.c.l.b16 %v2038
      %v2075 = vunpack.c.l.b16 %v2039
      %v2076 = vunpack.c.l.b16 %v2040
      %v2077 = vunpack.c.l.b16 %v2041
      %v2078 = vunpack.c.l.b16 %v2042
      %v2079 = vunpack.c.l.b16 %v2043
      %v2080 = vunpack.c.l.b16 %v2044
      %v2081 = vunpack.c.l.b16 %v2045
      %v2082 = vpack.c.b16 %v2067, %v2066
      %v2083 = vpack.c.b16 %v2069, %v2068
      %v2084 = vpack.c.b16 %v2071, %v2070
      %v2085 = vpack.c.b16 %v2073, %v2072
      %v2086 = vpack.c.b16 %v2075, %v2074
      %v2087 = vpack.c.b16 %v2077, %v2076
      %v2088 = vpack.c.b16 %v2079, %v2078
      %v2089 = vpack.c.b16 %v2081, %v2080
      %2098 = vmatpush.bf16.msra.mxu0 %v2089
      %2099 = vmatpush.bf16.msra.mxu0 %v2088
      %2100 = vmatpush.bf16.msra.mxu0 %v2087
      %2101 = vmatpush.bf16.msra.mxu0 %v2086
      %2102 = vmatpush.bf16.msra.mxu0 %v2085
      %2103 = vmatpush.bf16.msra.mxu0 %v2084
      %2104 = vmatpush.bf16.msra.mxu0 %v2083
      %2105 = vmatpush.bf16.msra.mxu0 %v2082
      %2106 = vmatmul.bf16.gmra.mxu0 %v1998
      %v2107 = vpop.f32.mrf.mxu0
      %v2108 = vadd.f32 %v2048, %v2107
      %v2109 = vpop.f32.mrf.mxu0
      %v2110 = vadd.f32 %v2048, %v2109
      %2111 = vmatmul.bf16.gmra.mxu0 %v1999
      %v2112 = vpop.f32.mrf.mxu0
      %v2113 = vadd.f32 %v2048, %v2112
      %v2114 = vpop.f32.mrf.mxu0
      %v2115 = vadd.f32 %v2048, %v2114
      %2116 = vmatmul.bf16.gmra.mxu0 %v2000
      %v2117 = vpop.f32.mrf.mxu0
      %v2118 = vadd.f32 %v2048, %v2117
      %v2119 = vpop.f32.mrf.mxu0
      %v2120 = vadd.f32 %v2048, %v2119
      %2121 = vmatmul.bf16.gmra.mxu0 %v2001
      %v2122 = vpop.f32.mrf.mxu0
      %v2123 = vadd.f32 %v2048, %v2122
      %v2124 = vpop.f32.mrf.mxu0
      %v2125 = vadd.f32 %v2048, %v2124
      %2126 = vmatmul.bf16.gmra.mxu0 %v2002
      %v2127 = vpop.f32.mrf.mxu0
      %v2128 = vadd.f32 %v2048, %v2127
      %v2129 = vpop.f32.mrf.mxu0
      %v2130 = vadd.f32 %v2048, %v2129
      %2131 = vmatmul.bf16.gmra.mxu0 %v2003
      %v2132 = vpop.f32.mrf.mxu0
      %v2133 = vadd.f32 %v2048, %v2132
      %v2134 = vpop.f32.mrf.mxu0
      %v2135 = vadd.f32 %v2048, %v2134
      %2136 = vmatmul.bf16.gmra.mxu0 %v2004
      %v2137 = vpop.f32.mrf.mxu0
      %v2138 = vadd.f32 %v2048, %v2137
      %v2139 = vpop.f32.mrf.mxu0
      %v2140 = vadd.f32 %v2048, %v2139
      %2141 = vmatmul.bf16.gmra.mxu0 %v2005
      %v2142 = vpop.f32.mrf.mxu0
      %v2143 = vadd.f32 %v2048, %v2142
      %v2144 = vpop.f32.mrf.mxu0
      %v2145 = vadd.f32 %v2048, %v2144
      %2146 = vmatmul.bf16.gmra.mxu0 %v2006
      %v2147 = vpop.f32.mrf.mxu0
      %v2148 = vadd.f32 %v2048, %v2147
      %v2149 = vpop.f32.mrf.mxu0
      %v2150 = vadd.f32 %v2048, %v2149
      %2151 = vmatmul.bf16.gmra.mxu0 %v2007
      %v2152 = vpop.f32.mrf.mxu0
      %v2153 = vadd.f32 %v2048, %v2152
      %v2154 = vpop.f32.mrf.mxu0
      %v2155 = vadd.f32 %v2048, %v2154
      %2156 = vmatmul.bf16.gmra.mxu0 %v2008
      %v2157 = vpop.f32.mrf.mxu0
      %v2158 = vadd.f32 %v2048, %v2157
      %v2159 = vpop.f32.mrf.mxu0
      %v2160 = vadd.f32 %v2048, %v2159
      %2161 = vmatmul.bf16.gmra.mxu0 %v2009
      %v2162 = vpop.f32.mrf.mxu0
      %v2163 = vadd.f32 %v2048, %v2162
      %v2164 = vpop.f32.mrf.mxu0
      %v2165 = vadd.f32 %v2048, %v2164
      %2166 = vmatmul.bf16.gmra.mxu0 %v2010
      %v2167 = vpop.f32.mrf.mxu0
      %v2168 = vadd.f32 %v2048, %v2167
      %v2169 = vpop.f32.mrf.mxu0
      %v2170 = vadd.f32 %v2048, %v2169
      %2171 = vmatmul.bf16.gmra.mxu0 %v2011
      %v2172 = vpop.f32.mrf.mxu0
      %v2173 = vadd.f32 %v2048, %v2172
      %v2174 = vpop.f32.mrf.mxu0
      %v2175 = vadd.f32 %v2048, %v2174
      %2176 = vmatmul.bf16.gmra.mxu0 %v2012
      %v2177 = vpop.f32.mrf.mxu0
      %v2178 = vadd.f32 %v2048, %v2177
      %v2179 = vpop.f32.mrf.mxu0
      %v2180 = vadd.f32 %v2048, %v2179
      %2181 = vmatmul.bf16.gmra.mxu0 %v2013
      %v2182 = vpop.f32.mrf.mxu0
      %v2183 = vadd.f32 %v2048, %v2182
      %v2184 = vpop.f32.mrf.mxu0
      %v2185 = vadd.f32 %v2048, %v2184
      %2186 = vmatmul.bf16.gmra.mxu0 %v2014
      %v2187 = vpop.f32.mrf.mxu0
      %v2188 = vadd.f32 %v2048, %v2187
      %v2189 = vpop.f32.mrf.mxu0
      %v2190 = vadd.f32 %v2048, %v2189
      %2191 = vmatmul.bf16.gmra.mxu0 %v2015
      %v2192 = vpop.f32.mrf.mxu0
      %v2193 = vadd.f32 %v2048, %v2192
      %v2194 = vpop.f32.mrf.mxu0
      %v2195 = vadd.f32 %v2048, %v2194
      %2196 = vmatmul.bf16.gmra.mxu0 %v2016
      %v2197 = vpop.f32.mrf.mxu0
      %v2198 = vadd.f32 %v2048, %v2197
      %v2199 = vpop.f32.mrf.mxu0
      %v2200 = vadd.f32 %v2048, %v2199
      %2201 = vmatmul.bf16.gmra.mxu0 %v2017
      %v2202 = vpop.f32.mrf.mxu0
      %v2203 = vadd.f32 %v2048, %v2202
      %v2204 = vpop.f32.mrf.mxu0
      %v2205 = vadd.f32 %v2048, %v2204
      %2206 = vmatmul.bf16.gmra.mxu0 %v2018
      %v2207 = vpop.f32.mrf.mxu0
      %v2208 = vadd.f32 %v2048, %v2207
      %v2209 = vpop.f32.mrf.mxu0
      %v2210 = vadd.f32 %v2048, %v2209
      %2211 = vmatmul.bf16.gmra.mxu0 %v2019
      %v2212 = vpop.f32.mrf.mxu0
      %v2213 = vadd.f32 %v2048, %v2212
      %v2214 = vpop.f32.mrf.mxu0
      %v2215 = vadd.f32 %v2048, %v2214
      %2216 = vmatmul.bf16.gmra.mxu0 %v2020
      %v2217 = vpop.f32.mrf.mxu0
      %v2218 = vadd.f32 %v2048, %v2217
      %v2219 = vpop.f32.mrf.mxu0
      %v2220 = vadd.f32 %v2048, %v2219
      %2221 = vmatmul.bf16.gmra.mxu0 %v2021
      %v2222 = vpop.f32.mrf.mxu0
      %v2223 = vadd.f32 %v2048, %v2222
      %v2224 = vpop.f32.mrf.mxu0
      %v2225 = vadd.f32 %v2048, %v2224
      %2226 = vmatmul.bf16.gmra.mxu0 %v2022
      %v2227 = vpop.f32.mrf.mxu0
      %v2228 = vadd.f32 %v2048, %v2227
      %v2229 = vpop.f32.mrf.mxu0
      %v2230 = vadd.f32 %v2048, %v2229
      %2231 = vmatmul.bf16.gmra.mxu0 %v2023
      %v2232 = vpop.f32.mrf.mxu0
      %v2233 = vadd.f32 %v2048, %v2232
      %v2234 = vpop.f32.mrf.mxu0
      %v2235 = vadd.f32 %v2048, %v2234
      %2236 = vmatmul.bf16.gmra.mxu0 %v2024
      %v2237 = vpop.f32.mrf.mxu0
      %v2238 = vadd.f32 %v2048, %v2237
      %v2239 = vpop.f32.mrf.mxu0
      %v2240 = vadd.f32 %v2048, %v2239
      %2241 = vmatmul.bf16.gmra.mxu0 %v2025
      %v2242 = vpop.f32.mrf.mxu0
      %v2243 = vadd.f32 %v2048, %v2242
      %v2244 = vpop.f32.mrf.mxu0
      %v2245 = vadd.f32 %v2048, %v2244
      %2246 = vmatmul.bf16.gmra.mxu0 %v2026
      %v2247 = vpop.f32.mrf.mxu0
      %v2248 = vadd.f32 %v2048, %v2247
      %v2249 = vpop.f32.mrf.mxu0
      %v2250 = vadd.f32 %v2048, %v2249
      %2251 = vmatmul.bf16.gmra.mxu0 %v2027
      %v2252 = vpop.f32.mrf.mxu0
      %v2253 = vadd.f32 %v2048, %v2252
      %v2254 = vpop.f32.mrf.mxu0
      %v2255 = vadd.f32 %v2048, %v2254
      %2256 = vmatmul.bf16.gmra.mxu0 %v2028
      %v2257 = vpop.f32.mrf.mxu0
      %v2258 = vadd.f32 %v2048, %v2257
      %v2259 = vpop.f32.mrf.mxu0
      %v2260 = vadd.f32 %v2048, %v2259
      %2261 = vmatmul.bf16.gmra.mxu0 %v2029
      %v2262 = vpop.f32.mrf.mxu0
      %v2263 = vadd.f32 %v2048, %v2262
      %v2264 = vpop.f32.mrf.mxu0
      %2265 = vdwg.mxu0
      %2266 = vst.msk [vmem:[%s334] sm:$0xff] %vm437, %v2108
      %2267 = vst.msk [vmem:[%s334 + $0x8] sm:$0xff] %vm437, %v2110
      %2268 = vst.msk [vmem:[%s334 + $0x10] sm:$0xff] %vm437, %v2113
      %2269 = vst.msk [vmem:[%s334 + $0x18] sm:$0xff] %vm437, %v2115
      %2270 = vst.msk [vmem:[%s334 + $0x20] sm:$0xff] %vm437, %v2118
      %2271 = vst.msk [vmem:[%s334 + $0x28] sm:$0xff] %vm437, %v2120
      %2272 = vst.msk [vmem:[%s334 + $0x30] sm:$0xff] %vm437, %v2123
      %2273 = vst.msk [vmem:[%s334 + $0x38] sm:$0xff] %vm437, %v2125
      %2274 = vst.msk [vmem:[%s334 + $0x40] sm:$0xff] %vm437, %v2128
      %2275 = vst.msk [vmem:[%s334 + $0x48] sm:$0xff] %vm437, %v2130
      %2276 = vst.msk [vmem:[%s334 + $0x50] sm:$0xff] %vm437, %v2133
      %2277 = vst.msk [vmem:[%s334 + $0x58] sm:$0xff] %vm437, %v2135
      %2278 = vst.msk [vmem:[%s334 + $0x60] sm:$0xff] %vm437, %v2138
      %2279 = vst.msk [vmem:[%s334 + $0x68] sm:$0xff] %vm437, %v2140
      %2280 = vst.msk [vmem:[%s334 + $0x70] sm:$0xff] %vm437, %v2143
      %2281 = vst.msk [vmem:[%s334 + $0x78] sm:$0xff] %vm437, %v2145
      %2282 = vst.msk [vmem:[%s334 + $0x80] sm:$0xff] %vm437, %v2148
      %2283 = vst.msk [vmem:[%s334 + $0x88] sm:$0xff] %vm437, %v2150
      %2284 = vst.msk [vmem:[%s334 + $0x90] sm:$0xff] %vm437, %v2153
      %2285 = vst.msk [vmem:[%s334 + $0x98] sm:$0xff] %vm437, %v2155
      %2286 = vst.msk [vmem:[%s334 + $0xa0] sm:$0xff] %vm437, %v2158
      %2287 = vst.msk [vmem:[%s334 + $0xa8] sm:$0xff] %vm437, %v2160
      %2288 = vst.msk [vmem:[%s334 + $0xb0] sm:$0xff] %vm437, %v2163
      %2289 = vst.msk [vmem:[%s334 + $0xb8] sm:$0xff] %vm437, %v2165
      %2290 = vst.msk [vmem:[%s334 + $0xc0] sm:$0xff] %vm437, %v2168
      %2291 = vst.msk [vmem:[%s334 + $0xc8] sm:$0xff] %vm437, %v2170
      %2292 = vst.msk [vmem:[%s334 + $0xd0] sm:$0xff] %vm437, %v2173
      %2293 = vst.msk [vmem:[%s334 + $0xd8] sm:$0xff] %vm437, %v2175
      %2294 = vst.msk [vmem:[%s334 + $0xe0] sm:$0xff] %vm437, %v2178
      %2295 = vst.msk [vmem:[%s334 + $0xe8] sm:$0xff] %vm437, %v2180
      %2296 = vst.msk [vmem:[%s334 + $0xf0] sm:$0xff] %vm437, %v2183
      %2297 = vst.msk [vmem:[%s334 + $0xf8] sm:$0xff] %vm437, %v2185
      %2298 = vst.msk [vmem:[%s334 + $0x100] sm:$0xff] %vm437, %v2188
      %2299 = vst.msk [vmem:[%s334 + $0x108] sm:$0xff] %vm437, %v2190
      %2300 = vst.msk [vmem:[%s334 + $0x110] sm:$0xff] %vm437, %v2193
      %2301 = vst.msk [vmem:[%s334 + $0x118] sm:$0xff] %vm437, %v2195
      %2302 = vst.msk [vmem:[%s334 + $0x120] sm:$0xff] %vm437, %v2198
      %2303 = vst.msk [vmem:[%s334 + $0x128] sm:$0xff] %vm437, %v2200
      %2304 = vst.msk [vmem:[%s334 + $0x130] sm:$0xff] %vm437, %v2203
      %2305 = vst.msk [vmem:[%s334 + $0x138] sm:$0xff] %vm437, %v2205
      %2306 = vst.msk [vmem:[%s334 + $0x140] sm:$0xff] %vm437, %v2208
      %2307 = vst.msk [vmem:[%s334 + $0x148] sm:$0xff] %vm437, %v2210
      %2308 = vst.msk [vmem:[%s334 + $0x150] sm:$0xff] %vm437, %v2213
      %2309 = vst.msk [vmem:[%s334 + $0x158] sm:$0xff] %vm437, %v2215
      %2310 = vst.msk [vmem:[%s334 + $0x160] sm:$0xff] %vm437, %v2218
      %2311 = vst.msk [vmem:[%s334 + $0x168] sm:$0xff] %vm437, %v2220
      %2312 = vst.msk [vmem:[%s334 + $0x170] sm:$0xff] %vm437, %v2223
      %2313 = vst.msk [vmem:[%s334 + $0x178] sm:$0xff] %vm437, %v2225
      %2314 = vst.msk [vmem:[%s334 + $0x180] sm:$0xff] %vm437, %v2228
      %2315 = vst.msk [vmem:[%s334 + $0x188] sm:$0xff] %vm437, %v2230
      %2316 = vst.msk [vmem:[%s334 + $0x190] sm:$0xff] %vm437, %v2233
      %2317 = vst.msk [vmem:[%s334 + $0x198] sm:$0xff] %vm437, %v2235
      %2318 = vst.msk [vmem:[%s334 + $0x1a0] sm:$0xff] %vm437, %v2238
      %2319 = vst.msk [vmem:[%s334 + $0x1a8] sm:$0xff] %vm437, %v2240
      %2320 = vst.msk [vmem:[%s334 + $0x1b0] sm:$0xff] %vm437, %v2243
      %2321 = vst.msk [vmem:[%s334 + $0x1b8] sm:$0xff] %vm437, %v2245
      %2322 = vst.msk [vmem:[%s334 + $0x1c0] sm:$0xff] %vm437, %v2248
      %2323 = vst.msk [vmem:[%s334 + $0x1c8] sm:$0xff] %vm437, %v2250
      %2324 = vst.msk [vmem:[%s334 + $0x1d0] sm:$0xff] %vm437, %v2253
      %2325 = vst.msk [vmem:[%s334 + $0x1d8] sm:$0xff] %vm437, %v2255
      %2326 = vst.msk [vmem:[%s334 + $0x1e0] sm:$0xff] %vm437, %v2258
      %2327 = vst.msk [vmem:[%s334 + $0x1e8] sm:$0xff] %vm437, %v2260
      %2328 = vst.msk [vmem:[%s334 + $0x1f0] sm:$0xff] %vm437, %v2263
      %s2329 = smul.u32 63, %s20
      %p2330 = scmp.lt.s32.totalorder %s2329, 125
      %s2331 = scalar_select %p2330, %s2329, 125
      %s2332 = smul.addr %s2331, 8
      %s2333 = scalar_lea.vmem %s9, %s2332
      // Predicated region
      $region57: #{mlp_forward.1} parent=55 // pred_check
        %p2334 = pneg %p232
      $region58: #{mlp_forward.1} parent=55 // pred_check_branch
        %2336 = sbr.rel (%p2334) target = $region60
      $region59: #{mlp_forward.1} parent=55 // pred_region
        %s2337 = smul.u32 63, %s20
      $region60: #{mlp_forward.1} parent=55 // pred_fallthru
        _
    $region56: #{mlp_forward.1} parent=5 // pred_fallthru
      _
    %p2338 = scmp.le.s32.totalorder 2, %s15
    // Predicated region
    $region61: #{mlp_forward.1} parent=5 // pred_check
      %p2339 = pneg %p2338
    $region62: #{mlp_forward.1} parent=5 // pred_check_branch
      %2341 = sbr.rel (%p2339) target = $region64
    $region63: #{mlp_forward.1} parent=5 // pred_region
      %s2342 = ssub.s32 %s15, 2
      // Predicated region
      $region65: #{mlp_forward.1} parent=63 // pred_check
        %p2343 = pneg %p238
      $region66: #{mlp_forward.1} parent=63 // pred_check_branch
        %2345 = sbr.rel (%p2343) target = $region68
      $region67: #{mlp_forward.1} parent=63 // pred_region
        %s2346 = smul.u32 63, %s21
        %p2347 = scmp.lt.s32.totalorder %s2346, 125
        %s2348 = scalar_select %p2347, %s2346, 125
        %s2349 = smul.addr %s2348, 8
        %s2350 = scalar_lea.vmem %s9, %s2349
      $region68: #{mlp_forward.1} parent=63 // pred_fallthru
        _
    $region64: #{mlp_forward.1} parent=5 // pred_fallthru
      _
  $region6: #{mlp_forward.1} parent=0 // loop_footer
    %s19 = sadd.s32 1, %s15
  $region7: #{mlp_forward.1} parent=0 // loop_footer_branch
    %14 = sbr.rel target = $region3
  $region8: #{mlp_forward.1} parent=0 // loop_exit
    _

</llo_original>
